<compile_context>
chip_gen: v5e
topology: v5e:2x2
jax: 0.10.0
libtpu: 0.0.40
codegen_flags: <defaults>
</compile_context>

<pallas_src>
import functools

import jax
import jax.numpy as jnp
from jax import lax
from jax.experimental import pallas as pl
from jax.experimental.pallas import tpu as pltpu

GATE_LANES = 128   # each GRU gate gets its own 128-lane vreg slot
H_PAD = 128        # hidden state carried as one full vreg of lanes (real dims 0:H)


# ------------------------------ in-kernel GRU step -------------------------------------
def _gru_step(gi, h, whh, bhh):
    """One GRU step on lane-padded tensors.

    gi : (1, 3*GATE_LANES)  hoisted input projection for this step
    h  : (1, H_PAD)         previous hidden state (real values in lanes [0, H); rest 0)
    whh: (H_PAD, 3*GATE_LANES), bhh: (1, 3*GATE_LANES)   (zero-padded)
    Gate order (reset | update | new) matches nn.GRU. Gate slices start at lane
    offsets 0/128/256 -> pure VPU/EUP math, no cross-lane shuffles per step.
    """
    G = GATE_LANES
    gh = jnp.dot(h, whh, preferred_element_type=jnp.float32) + bhh     # (1, 3G)
    r = jax.nn.sigmoid(gi[:, 0:G] + gh[:, 0:G])
    z = jax.nn.sigmoid(gi[:, G:2 * G] + gh[:, G:2 * G])
    n = jnp.tanh(gi[:, 2 * G:3 * G] + r * gh[:, 2 * G:3 * G])
    return (1.0 - z) * n + z * h          # padded lanes stay exactly 0


# ------------------------------- fused forward kernel ----------------------------------
def fused_kernel(loc_ref, tim_ref, emb_loc_ref, emb_tim_ref,
                 wih_ref, bih_ref,
                 whh_e_ref, bhh_e_ref, whh_d_ref, bhh_d_ref,
                 wf_h_ref, wf_c_ref, bf_ref, out_ref,
                 *, target_len, loc_size):
    G3 = 3 * GATE_LANES
    T = loc_ref.shape[0]
    L = T - target_len                      # encoder (history) length
    D = target_len                          # decoder length
    S_pad, V_pad = out_ref.shape

    # ---- embedding gather (in-kernel one-hot matmul; no XLA gather/concat dispatch) ---
    loc_vocab = emb_loc_ref.shape[0]        # padded to 128 rows on host
    tim_vocab = emb_tim_ref.shape[0]
    loc_ids = loc_ref[...]                  # (T, 1) int32
    tim_ids = tim_ref[...]
    oh_loc = (lax.broadcasted_iota(jnp.int32, (T, loc_vocab), 1) == loc_ids
              ).astype(jnp.float32)                              # (T, 128)
    oh_tim = (lax.broadcasted_iota(jnp.int32, (T, tim_vocab), 1) == tim_ids
              ).astype(jnp.float32)                              # (T, 128)
    loc_emb = jnp.dot(oh_loc, emb_loc_ref[...], preferred_element_type=jnp.float32)
    tim_emb = jnp.dot(oh_tim, emb_tim_ref[...], preferred_element_type=jnp.float32)
    e_loc = loc_emb.shape[1]

    # ---- hoisted input projections, both GRUs fused in one matmul (off critical path) -
    # wih_ref: (I, 2*3G) = [encoder gate slots | decoder gate slots];
    # rows 0:E_loc multiply the loc embedding, rows E_loc: the tim embedding, so the
    # x = concat(loc_emb, tim_emb) lane concat is never materialized.
    wih = wih_ref[...]
    gi_all = (jnp.dot(loc_emb, wih[:e_loc, :], preferred_element_type=jnp.float32)
              + jnp.dot(tim_emb, wih[e_loc:, :], preferred_element_type=jnp.float32)
              + bih_ref[...])                                     # (T, 2*3G)
    gi_enc = gi_all[:L, 0:G3]                                     # (L, 3G)
    gi_dec = gi_all[L:, G3:2 * G3]                                # (D, 3G)

    whh_e = whh_e_ref[...]; bhh_e = bhh_e_ref[...]
    whh_d = whh_d_ref[...]; bhh_d = bhh_d_ref[...]

    # ---- encoder / decoder recurrences, co-run (independent chains, static unroll) ----
    he = jnp.zeros((1, H_PAD), jnp.float32)
    hd = jnp.zeros((1, H_PAD), jnp.float32)
    enc_hs, dec_hs = [], []
    for t in range(L):
        he = _gru_step(gi_enc[t:t + 1, :], he, whh_e, bhh_e)
        enc_hs.append(he)
        if t < D:                            # decoder steps hide under encoder steps
            hd = _gru_step(gi_dec[t:t + 1, :], hd, whh_d, bhh_d)
            dec_hs.append(hd)
    hh = jnp.concatenate(enc_hs, axis=0)                          # (L, H_PAD)
    if S_pad > D:                                                 # sublane-dense rows
        dec_hs.append(jnp.zeros((S_pad - D, H_PAD), jnp.float32))
    hs = jnp.concatenate(dec_hs, axis=0)                          # (S_pad, H_PAD)

    # ---- dot attention (contract dim 1 of both -> no explicit transpose) --------------
    e = lax.dot_general(hs, hh, (((1,), (1,)), ((), ())),
                        preferred_element_type=jnp.float32)       # (S_pad, L)
    e = e - jnp.max(e, axis=1, keepdims=True)
    p = jnp.exp(e)
    attn = p / jnp.sum(p, axis=1, keepdims=True)                  # exact reciprocal
    ctx = jnp.dot(attn, hh, preferred_element_type=jnp.float32)   # (S_pad, H_PAD)

    # ---- fc_final split (no lane concat) + masked log_softmax -------------------------
    y = (jnp.dot(hs, wf_h_ref[...], preferred_element_type=jnp.float32)
         + jnp.dot(ctx, wf_c_ref[...], preferred_element_type=jnp.float32)
         + bf_ref[...])                                           # (S_pad, V_pad)
    lane = lax.broadcasted_iota(jnp.int32, (S_pad, V_pad), 1)
    y = jnp.where(lane < loc_size, y, jnp.float32(-1e30))
    m = jnp.max(y, axis=1, keepdims=True)
    zc = y - m
    out_ref[...] = zc - jnp.log(jnp.sum(jnp.exp(zc), axis=1, keepdims=True))


# ----------------------------------- full forward --------------------------------------
def forward(kparams, loc, tim, target_len, loc_size):
    """One dispatch: the pallas_call (plus the final un-pad slice)."""
    s_pad = ((target_len + 7) // 8) * 8
    v_pad = ((loc_size + 127) // 128) * 128
    kernel = functools.partial(fused_kernel, target_len=target_len, loc_size=loc_size)
    args = (loc, tim, kparams["emb_loc"], kparams["emb_tim"],
            kparams["wih"], kparams["bih"],
            kparams["whh_e"], kparams["bhh_e"], kparams["whh_d"], kparams["bhh_d"],
            kparams["wf_h"], kparams["wf_c"], kparams["bf"])
    out = pl.pallas_call(
        kernel,
        out_shape=jax.ShapeDtypeStruct((s_pad, v_pad), jnp.float32),
        in_specs=[pl.BlockSpec(memory_space=pltpu.MemorySpace.VMEM)] * len(args),
        out_specs=pl.BlockSpec(memory_space=pltpu.MemorySpace.VMEM),
    )(*args)
    return out[:target_len, :loc_size]


# --------------------------- one-time parameter packing --------------------------------
def _pad_gate_cols(w, H):
    """(R, 3H) packed (r|z|n) -> (R, 3*GATE_LANES): gate g at lanes [g*128, g*128+H)."""
    out = jnp.zeros((w.shape[0], 3 * GATE_LANES), w.dtype)
    for g in range(3):
        out = out.at[:, g * GATE_LANES:g * GATE_LANES + H].set(w[:, g * H:(g + 1) * H])
    return out


def _pad_rows(w, rows):
    return jnp.pad(w, ((0, rows - w.shape[0]), (0, 0)))


def pack_params(params, hidden_size, loc_size):
    H = hidden_size
    v_pad = ((loc_size + 127) // 128) * 128
    ewih, ewhh, ebih, ebhh = params["enc"]
    dwih, dwhh, dbih, dbhh = params["dec"]
    wf, bf = params["wf"], params["bf"]
    return {
        "emb_loc": _pad_rows(params["emb_loc"], 128),
        "emb_tim": _pad_rows(params["emb_tim"], 128),
        # fused encoder|decoder input projection, lane-aligned gate slots
        "wih": jnp.concatenate([_pad_gate_cols(ewih, H), _pad_gate_cols(dwih, H)], axis=1),
        "bih": jnp.concatenate([_pad_gate_cols(ebih, H), _pad_gate_cols(dbih, H)], axis=1),
        "whh_e": _pad_rows(_pad_gate_cols(ewhh, H), H_PAD),
        "bhh_e": _pad_gate_cols(ebhh, H),
        "whh_d": _pad_rows(_pad_gate_cols(dwhh, H), H_PAD),
        "bhh_d": _pad_gate_cols(dbhh, H),
        # fc_final split into the hidden-state and context halves, lane-padded logits
        "wf_h": _pad_rows(jnp.pad(wf[:H], ((0, 0), (0, v_pad - loc_size))), H_PAD),
        "wf_c": _pad_rows(jnp.pad(wf[H:], ((0, 0), (0, v_pad - loc_size))), H_PAD),
        "bf": jnp.pad(bf, ((0, 0), (0, v_pad - loc_size))),
    }


# -------------------------------- pure-JAX reference -----------------------------------
def gru_ref(x, wih, whh, bih, bhh, H):
    def step(h, xt):
        gi = xt @ wih + bih[0]
        gh = h @ whh + bhh[0]
        r = jax.nn.sigmoid(gi[:H] + gh[:H])
        z = jax.nn.sigmoid(gi[H:2 * H] + gh[H:2 * H])
        n = jnp.tanh(gi[2 * H:] + r * gh[2 * H:])
        h_new = (1.0 - z) * n + z * h
        return h_new, h_new

    _, hs = lax.scan(step, jnp.zeros((H,), jnp.float32), x)
    return hs


def forward_ref(params, loc, tim, target_len, hidden_size):
    loc_emb = params["emb_loc"][loc[:, 0]]
    tim_emb = params["emb_tim"][tim[:, 0]]
    x = jnp.concatenate([loc_emb, tim_emb], axis=1)
    hh = gru_ref(x[:-target_len], *params["enc"], H=hidden_size)
    hs = gru_ref(x[-target_len:], *params["dec"], H=hidden_size)
    e = hs @ hh.T
    attn = jax.nn.softmax(e, axis=1)          # F.softmax on 2D defaults to dim=1
    ctx = attn @ hh
    y = jnp.concatenate([hs, ctx], axis=1) @ params["wf"] + params["bf"]
    return jax.nn.log_softmax(y, axis=1)


# -------------------------------------- main --------------------------------------------
if __name__ == "__main__":
    # module hyper-parameters (small, synthetic)
    loc_size = 100
    loc_emb_size = 16
    tim_size = 24
    tim_emb_size = 16
    hidden_size = 32
    input_size = loc_emb_size + tim_emb_size
    T = 12
    target_len = 4

    key = jax.random.PRNGKey(0)
    ks = jax.random.split(key, 8)

    def gru_params(k):
        # Packed gate layout: columns ordered (reset | update | new), matching nn.GRU.
        k0, k1 = jax.random.split(k)
        wih = 0.1 * jax.random.normal(k0, (input_size, 3 * hidden_size), jnp.float32)
        whh = 0.1 * jax.random.normal(k1, (hidden_size, 3 * hidden_size), jnp.float32)
        bih = jnp.zeros((1, 3 * hidden_size), jnp.float32)   # init_weights: bias = 0
        bhh = jnp.zeros((1, 3 * hidden_size), jnp.float32)
        return (wih, whh, bih, bhh)

    params = {
        "emb_loc": 0.1 * jax.random.normal(ks[0], (loc_size, loc_emb_size), jnp.float32),
        "emb_tim": 0.1 * jax.random.normal(ks[1], (tim_size, tim_emb_size), jnp.float32),
        "enc": gru_params(ks[2]),
        "dec": gru_params(ks[3]),
        # fc_final on concat(hidden_state, context): stored transposed as (2H, loc_size)
        "wf": 0.1 * jax.random.normal(ks[4], (2 * hidden_size, loc_size), jnp.float32),
        "bf": jnp.zeros((1, loc_size), jnp.float32),          # init_weights: bias = 0
    }

    loc = jax.random.randint(ks[5], (T, 1), 0, loc_size, dtype=jnp.int32)
    tim = jax.random.randint(ks[6], (T, 1), 0, tim_size, dtype=jnp.int32)

    # All padding/packing happens exactly once, outside the dispatch path.
    kparams = pack_params(params, hidden_size, loc_size)

    fwd = jax.jit(functools.partial(forward, target_len=target_len, loc_size=loc_size))
    score = fwd(kparams, loc, tim)
    score = jax.block_until_ready(score)

    ref = forward_ref(params, loc, tim, target_len, hidden_size)
    assert score.shape == (target_len, loc_size)
    assert jnp.allclose(score, ref, atol=1e-3, rtol=1e-3), "Pallas kernel mismatch vs JAX reference"

    print("KERNEL_OK")
</pallas_src>

<mosaic_0001>
module attributes {stable_mosaic.version = 11 : i64} {
  func.func @fused_kernel(%arg0: memref<12x1xi32, #tpu.memory_space<vmem>>, %arg1: memref<12x1xi32, #tpu.memory_space<vmem>>, %arg2: memref<128x16xf32, #tpu.memory_space<vmem>>, %arg3: memref<128x16xf32, #tpu.memory_space<vmem>>, %arg4: memref<32x768xf32, #tpu.memory_space<vmem>>, %arg5: memref<1x768xf32, #tpu.memory_space<vmem>>, %arg6: memref<128x384xf32, #tpu.memory_space<vmem>>, %arg7: memref<1x384xf32, #tpu.memory_space<vmem>>, %arg8: memref<128x384xf32, #tpu.memory_space<vmem>>, %arg9: memref<1x384xf32, #tpu.memory_space<vmem>>, %arg10: memref<128x128xf32, #tpu.memory_space<vmem>>, %arg11: memref<128x128xf32, #tpu.memory_space<vmem>>, %arg12: memref<1x128xf32, #tpu.memory_space<vmem>>, %arg13: memref<8x128xf32, #tpu.memory_space<vmem>>) attributes {dimension_semantics = [], scalar_prefetch = 0 : i64, scratch_operands = 0 : i64, tpu.core_type = #tpu.core_type<tc>} {
    %c0 = arith.constant 0 : index
    %c0_0 = arith.constant 0 : index
    %0 = vector.load %arg0[%c0, %c0_0] : memref<12x1xi32, #tpu.memory_space<vmem>>, vector<12x1xi32>
    %c0_1 = arith.constant 0 : index
    %c0_2 = arith.constant 0 : index
    %1 = vector.load %arg1[%c0_1, %c0_2] : memref<12x1xi32, #tpu.memory_space<vmem>>, vector<12x1xi32>
    %2 = tpu.iota {dimensions = array<i32: 1>} : vector<12x128xi32>
    %3 = vector.broadcast %0 : vector<12x1xi32> to vector<12x128xi32>
    %4 = arith.cmpi eq, %2, %3 : vector<12x128xi32>
    %5 = arith.extui %4 : vector<12x128xi1> to vector<12x128xi32>
    %6 = arith.sitofp %5 : vector<12x128xi32> to vector<12x128xf32>
    %7 = tpu.iota {dimensions = array<i32: 1>} : vector<12x128xi32>
    %8 = vector.broadcast %1 : vector<12x1xi32> to vector<12x128xi32>
    %9 = arith.cmpi eq, %7, %8 : vector<12x128xi32>
    %10 = arith.extui %9 : vector<12x128xi1> to vector<12x128xi32>
    %11 = arith.sitofp %10 : vector<12x128xi32> to vector<12x128xf32>
    %c0_3 = arith.constant 0 : index
    %c0_4 = arith.constant 0 : index
    %12 = vector.load %arg2[%c0_3, %c0_4] : memref<128x16xf32, #tpu.memory_space<vmem>>, vector<128x16xf32>
    %cst = arith.constant dense<0.000000e+00> : vector<12x16xf32>
    %13 = tpu.matmul %6, %12, %cst {dimension_numbers = #tpu.dot_dimension_numbers<[1], [0], [0], [1], [0, 0, 1, 1], [], []>} : vector<12x128xf32>, vector<128x16xf32>, vector<12x16xf32> -> vector<12x16xf32>
    %c0_5 = arith.constant 0 : index
    %c0_6 = arith.constant 0 : index
    %14 = vector.load %arg3[%c0_5, %c0_6] : memref<128x16xf32, #tpu.memory_space<vmem>>, vector<128x16xf32>
    %cst_7 = arith.constant dense<0.000000e+00> : vector<12x16xf32>
    %15 = tpu.matmul %11, %14, %cst_7 {dimension_numbers = #tpu.dot_dimension_numbers<[1], [0], [0], [1], [0, 0, 1, 1], [], []>} : vector<12x128xf32>, vector<128x16xf32>, vector<12x16xf32> -> vector<12x16xf32>
    %c0_8 = arith.constant 0 : index
    %c0_9 = arith.constant 0 : index
    %16 = vector.load %arg4[%c0_8, %c0_9] : memref<32x768xf32, #tpu.memory_space<vmem>>, vector<32x768xf32>
    %17 = vector.extract_strided_slice %16 {offsets = [0, 0], sizes = [16, 768], strides = [1, 1]} : vector<32x768xf32> to vector<16x768xf32>
    %cst_10 = arith.constant dense<0.000000e+00> : vector<12x768xf32>
    %18 = tpu.matmul %13, %17, %cst_10 {dimension_numbers = #tpu.dot_dimension_numbers<[1], [0], [0], [1], [0, 0, 1, 1], [], []>} : vector<12x16xf32>, vector<16x768xf32>, vector<12x768xf32> -> vector<12x768xf32>
    %19 = vector.extract_strided_slice %16 {offsets = [16, 0], sizes = [16, 768], strides = [1, 1]} : vector<32x768xf32> to vector<16x768xf32>
    %cst_11 = arith.constant dense<0.000000e+00> : vector<12x768xf32>
    %20 = tpu.matmul %15, %19, %cst_11 {dimension_numbers = #tpu.dot_dimension_numbers<[1], [0], [0], [1], [0, 0, 1, 1], [], []>} : vector<12x16xf32>, vector<16x768xf32>, vector<12x768xf32> -> vector<12x768xf32>
    %21 = arith.addf %18, %20 : vector<12x768xf32>
    %c0_12 = arith.constant 0 : index
    %c0_13 = arith.constant 0 : index
    %22 = vector.load %arg5[%c0_12, %c0_13] : memref<1x768xf32, #tpu.memory_space<vmem>>, vector<1x768xf32>
    %23 = vector.broadcast %22 : vector<1x768xf32> to vector<12x768xf32>
    %24 = arith.addf %21, %23 : vector<12x768xf32>
    %25 = vector.extract_strided_slice %24 {offsets = [0, 0], sizes = [8, 384], strides = [1, 1]} : vector<12x768xf32> to vector<8x384xf32>
    %26 = vector.extract_strided_slice %24 {offsets = [8, 384], sizes = [4, 384], strides = [1, 1]} : vector<12x768xf32> to vector<4x384xf32>
    %c0_14 = arith.constant 0 : index
    %c0_15 = arith.constant 0 : index
    %27 = vector.load %arg6[%c0_14, %c0_15] : memref<128x384xf32, #tpu.memory_space<vmem>>, vector<128x384xf32>
    %c0_16 = arith.constant 0 : index
    %c0_17 = arith.constant 0 : index
    %28 = vector.load %arg7[%c0_16, %c0_17] : memref<1x384xf32, #tpu.memory_space<vmem>>, vector<1x384xf32>
    %c0_18 = arith.constant 0 : index
    %c0_19 = arith.constant 0 : index
    %29 = vector.load %arg8[%c0_18, %c0_19] : memref<128x384xf32, #tpu.memory_space<vmem>>, vector<128x384xf32>
    %c0_20 = arith.constant 0 : index
    %c0_21 = arith.constant 0 : index
    %30 = vector.load %arg9[%c0_20, %c0_21] : memref<1x384xf32, #tpu.memory_space<vmem>>, vector<1x384xf32>
    %cst_22 = arith.constant 0.000000e+00 : f32
    %31 = vector.broadcast %cst_22 : f32 to vector<1x128xf32>
    %cst_23 = arith.constant 0.000000e+00 : f32
    %32 = vector.broadcast %cst_23 : f32 to vector<1x128xf32>
    %33 = vector.extract_strided_slice %25 {offsets = [0, 0], sizes = [1, 384], strides = [1, 1]} : vector<8x384xf32> to vector<1x384xf32>
    %cst_24 = arith.constant dense<0.000000e+00> : vector<1x384xf32>
    %34 = tpu.matmul %31, %27, %cst_24 {dimension_numbers = #tpu.dot_dimension_numbers<[1], [0], [0], [1], [0, 0, 1, 1], [], []>} : vector<1x128xf32>, vector<128x384xf32>, vector<1x384xf32> -> vector<1x384xf32>
    %35 = arith.addf %34, %28 : vector<1x384xf32>
    %36 = vector.extract_strided_slice %33 {offsets = [0, 0], sizes = [1, 128], strides = [1, 1]} : vector<1x384xf32> to vector<1x128xf32>
    %37 = vector.extract_strided_slice %35 {offsets = [0, 0], sizes = [1, 128], strides = [1, 1]} : vector<1x384xf32> to vector<1x128xf32>
    %38 = arith.addf %36, %37 : vector<1x128xf32>
    %39 = arith.negf %38 : vector<1x128xf32>
    %40 = math.exp %39 : vector<1x128xf32>
    %cst_25 = arith.constant 1.000000e+00 : f32
    %41 = vector.broadcast %cst_25 : f32 to vector<1x128xf32>
    %42 = arith.addf %41, %40 : vector<1x128xf32>
    %43 = arith.divf %41, %42 : vector<1x128xf32>
    %44 = vector.extract_strided_slice %33 {offsets = [0, 128], sizes = [1, 128], strides = [1, 1]} : vector<1x384xf32> to vector<1x128xf32>
    %45 = vector.extract_strided_slice %35 {offsets = [0, 128], sizes = [1, 128], strides = [1, 1]} : vector<1x384xf32> to vector<1x128xf32>
    %46 = arith.addf %44, %45 : vector<1x128xf32>
    %47 = arith.negf %46 : vector<1x128xf32>
    %48 = math.exp %47 : vector<1x128xf32>
    %cst_26 = arith.constant 1.000000e+00 : f32
    %49 = vector.broadcast %cst_26 : f32 to vector<1x128xf32>
    %50 = arith.addf %49, %48 : vector<1x128xf32>
    %51 = arith.divf %49, %50 : vector<1x128xf32>
    %52 = vector.extract_strided_slice %33 {offsets = [0, 256], sizes = [1, 128], strides = [1, 1]} : vector<1x384xf32> to vector<1x128xf32>
    %53 = vector.extract_strided_slice %35 {offsets = [0, 256], sizes = [1, 128], strides = [1, 1]} : vector<1x384xf32> to vector<1x128xf32>
    %54 = arith.mulf %43, %53 : vector<1x128xf32>
    %55 = arith.addf %52, %54 : vector<1x128xf32>
    %56 = math.tanh %55 : vector<1x128xf32>
    %cst_27 = arith.constant 1.000000e+00 : f32
    %57 = vector.broadcast %cst_27 : f32 to vector<1x128xf32>
    %58 = arith.subf %57, %51 : vector<1x128xf32>
    %59 = arith.mulf %58, %56 : vector<1x128xf32>
    %60 = arith.mulf %51, %31 : vector<1x128xf32>
    %61 = arith.addf %59, %60 : vector<1x128xf32>
    %62 = vector.extract_strided_slice %26 {offsets = [0, 0], sizes = [1, 384], strides = [1, 1]} : vector<4x384xf32> to vector<1x384xf32>
    %cst_28 = arith.constant dense<0.000000e+00> : vector<1x384xf32>
    %63 = tpu.matmul %32, %29, %cst_28 {dimension_numbers = #tpu.dot_dimension_numbers<[1], [0], [0], [1], [0, 0, 1, 1], [], []>} : vector<1x128xf32>, vector<128x384xf32>, vector<1x384xf32> -> vector<1x384xf32>
    %64 = arith.addf %63, %30 : vector<1x384xf32>
    %65 = vector.extract_strided_slice %62 {offsets = [0, 0], sizes = [1, 128], strides = [1, 1]} : vector<1x384xf32> to vector<1x128xf32>
    %66 = vector.extract_strided_slice %64 {offsets = [0, 0], sizes = [1, 128], strides = [1, 1]} : vector<1x384xf32> to vector<1x128xf32>
    %67 = arith.addf %65, %66 : vector<1x128xf32>
    %68 = arith.negf %67 : vector<1x128xf32>
    %69 = math.exp %68 : vector<1x128xf32>
    %cst_29 = arith.constant 1.000000e+00 : f32
    %70 = vector.broadcast %cst_29 : f32 to vector<1x128xf32>
    %71 = arith.addf %70, %69 : vector<1x128xf32>
    %72 = arith.divf %70, %71 : vector<1x128xf32>
    %73 = vector.extract_strided_slice %62 {offsets = [0, 128], sizes = [1, 128], strides = [1, 1]} : vector<1x384xf32> to vector<1x128xf32>
    %74 = vector.extract_strided_slice %64 {offsets = [0, 128], sizes = [1, 128], strides = [1, 1]} : vector<1x384xf32> to vector<1x128xf32>
    %75 = arith.addf %73, %74 : vector<1x128xf32>
    %76 = arith.negf %75 : vector<1x128xf32>
    %77 = math.exp %76 : vector<1x128xf32>
    %cst_30 = arith.constant 1.000000e+00 : f32
    %78 = vector.broadcast %cst_30 : f32 to vector<1x128xf32>
    %79 = arith.addf %78, %77 : vector<1x128xf32>
    %80 = arith.divf %78, %79 : vector<1x128xf32>
    %81 = vector.extract_strided_slice %62 {offsets = [0, 256], sizes = [1, 128], strides = [1, 1]} : vector<1x384xf32> to vector<1x128xf32>
    %82 = vector.extract_strided_slice %64 {offsets = [0, 256], sizes = [1, 128], strides = [1, 1]} : vector<1x384xf32> to vector<1x128xf32>
    %83 = arith.mulf %72, %82 : vector<1x128xf32>
    %84 = arith.addf %81, %83 : vector<1x128xf32>
    %85 = math.tanh %84 : vector<1x128xf32>
    %cst_31 = arith.constant 1.000000e+00 : f32
    %86 = vector.broadcast %cst_31 : f32 to vector<1x128xf32>
    %87 = arith.subf %86, %80 : vector<1x128xf32>
    %88 = arith.mulf %87, %85 : vector<1x128xf32>
    %89 = arith.mulf %80, %32 : vector<1x128xf32>
    %90 = arith.addf %88, %89 : vector<1x128xf32>
    %91 = vector.extract_strided_slice %25 {offsets = [1, 0], sizes = [1, 384], strides = [1, 1]} : vector<8x384xf32> to vector<1x384xf32>
    %cst_32 = arith.constant dense<0.000000e+00> : vector<1x384xf32>
    %92 = tpu.matmul %61, %27, %cst_32 {dimension_numbers = #tpu.dot_dimension_numbers<[1], [0], [0], [1], [0, 0, 1, 1], [], []>} : vector<1x128xf32>, vector<128x384xf32>, vector<1x384xf32> -> vector<1x384xf32>
    %93 = arith.addf %92, %28 : vector<1x384xf32>
    %94 = vector.extract_strided_slice %91 {offsets = [0, 0], sizes = [1, 128], strides = [1, 1]} : vector<1x384xf32> to vector<1x128xf32>
    %95 = vector.extract_strided_slice %93 {offsets = [0, 0], sizes = [1, 128], strides = [1, 1]} : vector<1x384xf32> to vector<1x128xf32>
    %96 = arith.addf %94, %95 : vector<1x128xf32>
    %97 = arith.negf %96 : vector<1x128xf32>
    %98 = math.exp %97 : vector<1x128xf32>
    %cst_33 = arith.constant 1.000000e+00 : f32
    %99 = vector.broadcast %cst_33 : f32 to vector<1x128xf32>
    %100 = arith.addf %99, %98 : vector<1x128xf32>
    %101 = arith.divf %99, %100 : vector<1x128xf32>
    %102 = vector.extract_strided_slice %91 {offsets = [0, 128], sizes = [1, 128], strides = [1, 1]} : vector<1x384xf32> to vector<1x128xf32>
    %103 = vector.extract_strided_slice %93 {offsets = [0, 128], sizes = [1, 128], strides = [1, 1]} : vector<1x384xf32> to vector<1x128xf32>
    %104 = arith.addf %102, %103 : vector<1x128xf32>
    %105 = arith.negf %104 : vector<1x128xf32>
    %106 = math.exp %105 : vector<1x128xf32>
    %cst_34 = arith.constant 1.000000e+00 : f32
    %107 = vector.broadcast %cst_34 : f32 to vector<1x128xf32>
    %108 = arith.addf %107, %106 : vector<1x128xf32>
    %109 = arith.divf %107, %108 : vector<1x128xf32>
    %110 = vector.extract_strided_slice %91 {offsets = [0, 256], sizes = [1, 128], strides = [1, 1]} : vector<1x384xf32> to vector<1x128xf32>
    %111 = vector.extract_strided_slice %93 {offsets = [0, 256], sizes = [1, 128], strides = [1, 1]} : vector<1x384xf32> to vector<1x128xf32>
    %112 = arith.mulf %101, %111 : vector<1x128xf32>
    %113 = arith.addf %110, %112 : vector<1x128xf32>
    %114 = math.tanh %113 : vector<1x128xf32>
    %cst_35 = arith.constant 1.000000e+00 : f32
    %115 = vector.broadcast %cst_35 : f32 to vector<1x128xf32>
    %116 = arith.subf %115, %109 : vector<1x128xf32>
    %117 = arith.mulf %116, %114 : vector<1x128xf32>
    %118 = arith.mulf %109, %61 : vector<1x128xf32>
    %119 = arith.addf %117, %118 : vector<1x128xf32>
    %120 = vector.extract_strided_slice %26 {offsets = [1, 0], sizes = [1, 384], strides = [1, 1]} : vector<4x384xf32> to vector<1x384xf32>
    %cst_36 = arith.constant dense<0.000000e+00> : vector<1x384xf32>
    %121 = tpu.matmul %90, %29, %cst_36 {dimension_numbers = #tpu.dot_dimension_numbers<[1], [0], [0], [1], [0, 0, 1, 1], [], []>} : vector<1x128xf32>, vector<128x384xf32>, vector<1x384xf32> -> vector<1x384xf32>
    %122 = arith.addf %121, %30 : vector<1x384xf32>
    %123 = vector.extract_strided_slice %120 {offsets = [0, 0], sizes = [1, 128], strides = [1, 1]} : vector<1x384xf32> to vector<1x128xf32>
    %124 = vector.extract_strided_slice %122 {offsets = [0, 0], sizes = [1, 128], strides = [1, 1]} : vector<1x384xf32> to vector<1x128xf32>
    %125 = arith.addf %123, %124 : vector<1x128xf32>
    %126 = arith.negf %125 : vector<1x128xf32>
    %127 = math.exp %126 : vector<1x128xf32>
    %cst_37 = arith.constant 1.000000e+00 : f32
    %128 = vector.broadcast %cst_37 : f32 to vector<1x128xf32>
    %129 = arith.addf %128, %127 : vector<1x128xf32>
    %130 = arith.divf %128, %129 : vector<1x128xf32>
    %131 = vector.extract_strided_slice %120 {offsets = [0, 128], sizes = [1, 128], strides = [1, 1]} : vector<1x384xf32> to vector<1x128xf32>
    %132 = vector.extract_strided_slice %122 {offsets = [0, 128], sizes = [1, 128], strides = [1, 1]} : vector<1x384xf32> to vector<1x128xf32>
    %133 = arith.addf %131, %132 : vector<1x128xf32>
    %134 = arith.negf %133 : vector<1x128xf32>
    %135 = math.exp %134 : vector<1x128xf32>
    %cst_38 = arith.constant 1.000000e+00 : f32
    %136 = vector.broadcast %cst_38 : f32 to vector<1x128xf32>
    %137 = arith.addf %136, %135 : vector<1x128xf32>
    %138 = arith.divf %136, %137 : vector<1x128xf32>
    %139 = vector.extract_strided_slice %120 {offsets = [0, 256], sizes = [1, 128], strides = [1, 1]} : vector<1x384xf32> to vector<1x128xf32>
    %140 = vector.extract_strided_slice %122 {offsets = [0, 256], sizes = [1, 128], strides = [1, 1]} : vector<1x384xf32> to vector<1x128xf32>
    %141 = arith.mulf %130, %140 : vector<1x128xf32>
    %142 = arith.addf %139, %141 : vector<1x128xf32>
    %143 = math.tanh %142 : vector<1x128xf32>
    %cst_39 = arith.constant 1.000000e+00 : f32
    %144 = vector.broadcast %cst_39 : f32 to vector<1x128xf32>
    %145 = arith.subf %144, %138 : vector<1x128xf32>
    %146 = arith.mulf %145, %143 : vector<1x128xf32>
    %147 = arith.mulf %138, %90 : vector<1x128xf32>
    %148 = arith.addf %146, %147 : vector<1x128xf32>
    %149 = vector.extract_strided_slice %25 {offsets = [2, 0], sizes = [1, 384], strides = [1, 1]} : vector<8x384xf32> to vector<1x384xf32>
    %cst_40 = arith.constant dense<0.000000e+00> : vector<1x384xf32>
    %150 = tpu.matmul %119, %27, %cst_40 {dimension_numbers = #tpu.dot_dimension_numbers<[1], [0], [0], [1], [0, 0, 1, 1], [], []>} : vector<1x128xf32>, vector<128x384xf32>, vector<1x384xf32> -> vector<1x384xf32>
    %151 = arith.addf %150, %28 : vector<1x384xf32>
    %152 = vector.extract_strided_slice %149 {offsets = [0, 0], sizes = [1, 128], strides = [1, 1]} : vector<1x384xf32> to vector<1x128xf32>
    %153 = vector.extract_strided_slice %151 {offsets = [0, 0], sizes = [1, 128], strides = [1, 1]} : vector<1x384xf32> to vector<1x128xf32>
    %154 = arith.addf %152, %153 : vector<1x128xf32>
    %155 = arith.negf %154 : vector<1x128xf32>
    %156 = math.exp %155 : vector<1x128xf32>
    %cst_41 = arith.constant 1.000000e+00 : f32
    %157 = vector.broadcast %cst_41 : f32 to vector<1x128xf32>
    %158 = arith.addf %157, %156 : vector<1x128xf32>
    %159 = arith.divf %157, %158 : vector<1x128xf32>
    %160 = vector.extract_strided_slice %149 {offsets = [0, 128], sizes = [1, 128], strides = [1, 1]} : vector<1x384xf32> to vector<1x128xf32>
    %161 = vector.extract_strided_slice %151 {offsets = [0, 128], sizes = [1, 128], strides = [1, 1]} : vector<1x384xf32> to vector<1x128xf32>
    %162 = arith.addf %160, %161 : vector<1x128xf32>
    %163 = arith.negf %162 : vector<1x128xf32>
    %164 = math.exp %163 : vector<1x128xf32>
    %cst_42 = arith.constant 1.000000e+00 : f32
    %165 = vector.broadcast %cst_42 : f32 to vector<1x128xf32>
    %166 = arith.addf %165, %164 : vector<1x128xf32>
    %167 = arith.divf %165, %166 : vector<1x128xf32>
    %168 = vector.extract_strided_slice %149 {offsets = [0, 256], sizes = [1, 128], strides = [1, 1]} : vector<1x384xf32> to vector<1x128xf32>
    %169 = vector.extract_strided_slice %151 {offsets = [0, 256], sizes = [1, 128], strides = [1, 1]} : vector<1x384xf32> to vector<1x128xf32>
    %170 = arith.mulf %159, %169 : vector<1x128xf32>
    %171 = arith.addf %168, %170 : vector<1x128xf32>
    %172 = math.tanh %171 : vector<1x128xf32>
    %cst_43 = arith.constant 1.000000e+00 : f32
    %173 = vector.broadcast %cst_43 : f32 to vector<1x128xf32>
    %174 = arith.subf %173, %167 : vector<1x128xf32>
    %175 = arith.mulf %174, %172 : vector<1x128xf32>
    %176 = arith.mulf %167, %119 : vector<1x128xf32>
    %177 = arith.addf %175, %176 : vector<1x128xf32>
    %178 = vector.extract_strided_slice %26 {offsets = [2, 0], sizes = [1, 384], strides = [1, 1]} : vector<4x384xf32> to vector<1x384xf32>
    %cst_44 = arith.constant dense<0.000000e+00> : vector<1x384xf32>
    %179 = tpu.matmul %148, %29, %cst_44 {dimension_numbers = #tpu.dot_dimension_numbers<[1], [0], [0], [1], [0, 0, 1, 1], [], []>} : vector<1x128xf32>, vector<128x384xf32>, vector<1x384xf32> -> vector<1x384xf32>
    %180 = arith.addf %179, %30 : vector<1x384xf32>
    %181 = vector.extract_strided_slice %178 {offsets = [0, 0], sizes = [1, 128], strides = [1, 1]} : vector<1x384xf32> to vector<1x128xf32>
    %182 = vector.extract_strided_slice %180 {offsets = [0, 0], sizes = [1, 128], strides = [1, 1]} : vector<1x384xf32> to vector<1x128xf32>
    %183 = arith.addf %181, %182 : vector<1x128xf32>
    %184 = arith.negf %183 : vector<1x128xf32>
    %185 = math.exp %184 : vector<1x128xf32>
    %cst_45 = arith.constant 1.000000e+00 : f32
    %186 = vector.broadcast %cst_45 : f32 to vector<1x128xf32>
    %187 = arith.addf %186, %185 : vector<1x128xf32>
    %188 = arith.divf %186, %187 : vector<1x128xf32>
    %189 = vector.extract_strided_slice %178 {offsets = [0, 128], sizes = [1, 128], strides = [1, 1]} : vector<1x384xf32> to vector<1x128xf32>
    %190 = vector.extract_strided_slice %180 {offsets = [0, 128], sizes = [1, 128], strides = [1, 1]} : vector<1x384xf32> to vector<1x128xf32>
    %191 = arith.addf %189, %190 : vector<1x128xf32>
    %192 = arith.negf %191 : vector<1x128xf32>
    %193 = math.exp %192 : vector<1x128xf32>
    %cst_46 = arith.constant 1.000000e+00 : f32
    %194 = vector.broadcast %cst_46 : f32 to vector<1x128xf32>
    %195 = arith.addf %194, %193 : vector<1x128xf32>
    %196 = arith.divf %194, %195 : vector<1x128xf32>
    %197 = vector.extract_strided_slice %178 {offsets = [0, 256], sizes = [1, 128], strides = [1, 1]} : vector<1x384xf32> to vector<1x128xf32>
    %198 = vector.extract_strided_slice %180 {offsets = [0, 256], sizes = [1, 128], strides = [1, 1]} : vector<1x384xf32> to vector<1x128xf32>
    %199 = arith.mulf %188, %198 : vector<1x128xf32>
    %200 = arith.addf %197, %199 : vector<1x128xf32>
    %201 = math.tanh %200 : vector<1x128xf32>
    %cst_47 = arith.constant 1.000000e+00 : f32
    %202 = vector.broadcast %cst_47 : f32 to vector<1x128xf32>
    %203 = arith.subf %202, %196 : vector<1x128xf32>
    %204 = arith.mulf %203, %201 : vector<1x128xf32>
    %205 = arith.mulf %196, %148 : vector<1x128xf32>
    %206 = arith.addf %204, %205 : vector<1x128xf32>
    %207 = vector.extract_strided_slice %25 {offsets = [3, 0], sizes = [1, 384], strides = [1, 1]} : vector<8x384xf32> to vector<1x384xf32>
    %cst_48 = arith.constant dense<0.000000e+00> : vector<1x384xf32>
    %208 = tpu.matmul %177, %27, %cst_48 {dimension_numbers = #tpu.dot_dimension_numbers<[1], [0], [0], [1], [0, 0, 1, 1], [], []>} : vector<1x128xf32>, vector<128x384xf32>, vector<1x384xf32> -> vector<1x384xf32>
    %209 = arith.addf %208, %28 : vector<1x384xf32>
    %210 = vector.extract_strided_slice %207 {offsets = [0, 0], sizes = [1, 128], strides = [1, 1]} : vector<1x384xf32> to vector<1x128xf32>
    %211 = vector.extract_strided_slice %209 {offsets = [0, 0], sizes = [1, 128], strides = [1, 1]} : vector<1x384xf32> to vector<1x128xf32>
    %212 = arith.addf %210, %211 : vector<1x128xf32>
    %213 = arith.negf %212 : vector<1x128xf32>
    %214 = math.exp %213 : vector<1x128xf32>
    %cst_49 = arith.constant 1.000000e+00 : f32
    %215 = vector.broadcast %cst_49 : f32 to vector<1x128xf32>
    %216 = arith.addf %215, %214 : vector<1x128xf32>
    %217 = arith.divf %215, %216 : vector<1x128xf32>
    %218 = vector.extract_strided_slice %207 {offsets = [0, 128], sizes = [1, 128], strides = [1, 1]} : vector<1x384xf32> to vector<1x128xf32>
    %219 = vector.extract_strided_slice %209 {offsets = [0, 128], sizes = [1, 128], strides = [1, 1]} : vector<1x384xf32> to vector<1x128xf32>
    %220 = arith.addf %218, %219 : vector<1x128xf32>
    %221 = arith.negf %220 : vector<1x128xf32>
    %222 = math.exp %221 : vector<1x128xf32>
    %cst_50 = arith.constant 1.000000e+00 : f32
    %223 = vector.broadcast %cst_50 : f32 to vector<1x128xf32>
    %224 = arith.addf %223, %222 : vector<1x128xf32>
    %225 = arith.divf %223, %224 : vector<1x128xf32>
    %226 = vector.extract_strided_slice %207 {offsets = [0, 256], sizes = [1, 128], strides = [1, 1]} : vector<1x384xf32> to vector<1x128xf32>
    %227 = vector.extract_strided_slice %209 {offsets = [0, 256], sizes = [1, 128], strides = [1, 1]} : vector<1x384xf32> to vector<1x128xf32>
    %228 = arith.mulf %217, %227 : vector<1x128xf32>
    %229 = arith.addf %226, %228 : vector<1x128xf32>
    %230 = math.tanh %229 : vector<1x128xf32>
    %cst_51 = arith.constant 1.000000e+00 : f32
    %231 = vector.broadcast %cst_51 : f32 to vector<1x128xf32>
    %232 = arith.subf %231, %225 : vector<1x128xf32>
    %233 = arith.mulf %232, %230 : vector<1x128xf32>
    %234 = arith.mulf %225, %177 : vector<1x128xf32>
    %235 = arith.addf %233, %234 : vector<1x128xf32>
    %236 = vector.extract_strided_slice %26 {offsets = [3, 0], sizes = [1, 384], strides = [1, 1]} : vector<4x384xf32> to vector<1x384xf32>
    %cst_52 = arith.constant dense<0.000000e+00> : vector<1x384xf32>
    %237 = tpu.matmul %206, %29, %cst_52 {dimension_numbers = #tpu.dot_dimension_numbers<[1], [0], [0], [1], [0, 0, 1, 1], [], []>} : vector<1x128xf32>, vector<128x384xf32>, vector<1x384xf32> -> vector<1x384xf32>
    %238 = arith.addf %237, %30 : vector<1x384xf32>
    %239 = vector.extract_strided_slice %236 {offsets = [0, 0], sizes = [1, 128], strides = [1, 1]} : vector<1x384xf32> to vector<1x128xf32>
    %240 = vector.extract_strided_slice %238 {offsets = [0, 0], sizes = [1, 128], strides = [1, 1]} : vector<1x384xf32> to vector<1x128xf32>
    %241 = arith.addf %239, %240 : vector<1x128xf32>
    %242 = arith.negf %241 : vector<1x128xf32>
    %243 = math.exp %242 : vector<1x128xf32>
    %cst_53 = arith.constant 1.000000e+00 : f32
    %244 = vector.broadcast %cst_53 : f32 to vector<1x128xf32>
    %245 = arith.addf %244, %243 : vector<1x128xf32>
    %246 = arith.divf %244, %245 : vector<1x128xf32>
    %247 = vector.extract_strided_slice %236 {offsets = [0, 128], sizes = [1, 128], strides = [1, 1]} : vector<1x384xf32> to vector<1x128xf32>
    %248 = vector.extract_strided_slice %238 {offsets = [0, 128], sizes = [1, 128], strides = [1, 1]} : vector<1x384xf32> to vector<1x128xf32>
    %249 = arith.addf %247, %248 : vector<1x128xf32>
    %250 = arith.negf %249 : vector<1x128xf32>
    %251 = math.exp %250 : vector<1x128xf32>
    %cst_54 = arith.constant 1.000000e+00 : f32
    %252 = vector.broadcast %cst_54 : f32 to vector<1x128xf32>
    %253 = arith.addf %252, %251 : vector<1x128xf32>
    %254 = arith.divf %252, %253 : vector<1x128xf32>
    %255 = vector.extract_strided_slice %236 {offsets = [0, 256], sizes = [1, 128], strides = [1, 1]} : vector<1x384xf32> to vector<1x128xf32>
    %256 = vector.extract_strided_slice %238 {offsets = [0, 256], sizes = [1, 128], strides = [1, 1]} : vector<1x384xf32> to vector<1x128xf32>
    %257 = arith.mulf %246, %256 : vector<1x128xf32>
    %258 = arith.addf %255, %257 : vector<1x128xf32>
    %259 = math.tanh %258 : vector<1x128xf32>
    %cst_55 = arith.constant 1.000000e+00 : f32
    %260 = vector.broadcast %cst_55 : f32 to vector<1x128xf32>
    %261 = arith.subf %260, %254 : vector<1x128xf32>
    %262 = arith.mulf %261, %259 : vector<1x128xf32>
    %263 = arith.mulf %254, %206 : vector<1x128xf32>
    %264 = arith.addf %262, %263 : vector<1x128xf32>
    %265 = vector.extract_strided_slice %25 {offsets = [4, 0], sizes = [1, 384], strides = [1, 1]} : vector<8x384xf32> to vector<1x384xf32>
    %cst_56 = arith.constant dense<0.000000e+00> : vector<1x384xf32>
    %266 = tpu.matmul %235, %27, %cst_56 {dimension_numbers = #tpu.dot_dimension_numbers<[1], [0], [0], [1], [0, 0, 1, 1], [], []>} : vector<1x128xf32>, vector<128x384xf32>, vector<1x384xf32> -> vector<1x384xf32>
    %267 = arith.addf %266, %28 : vector<1x384xf32>
    %268 = vector.extract_strided_slice %265 {offsets = [0, 0], sizes = [1, 128], strides = [1, 1]} : vector<1x384xf32> to vector<1x128xf32>
    %269 = vector.extract_strided_slice %267 {offsets = [0, 0], sizes = [1, 128], strides = [1, 1]} : vector<1x384xf32> to vector<1x128xf32>
    %270 = arith.addf %268, %269 : vector<1x128xf32>
    %271 = arith.negf %270 : vector<1x128xf32>
    %272 = math.exp %271 : vector<1x128xf32>
    %cst_57 = arith.constant 1.000000e+00 : f32
    %273 = vector.broadcast %cst_57 : f32 to vector<1x128xf32>
    %274 = arith.addf %273, %272 : vector<1x128xf32>
    %275 = arith.divf %273, %274 : vector<1x128xf32>
    %276 = vector.extract_strided_slice %265 {offsets = [0, 128], sizes = [1, 128], strides = [1, 1]} : vector<1x384xf32> to vector<1x128xf32>
    %277 = vector.extract_strided_slice %267 {offsets = [0, 128], sizes = [1, 128], strides = [1, 1]} : vector<1x384xf32> to vector<1x128xf32>
    %278 = arith.addf %276, %277 : vector<1x128xf32>
    %279 = arith.negf %278 : vector<1x128xf32>
    %280 = math.exp %279 : vector<1x128xf32>
    %cst_58 = arith.constant 1.000000e+00 : f32
    %281 = vector.broadcast %cst_58 : f32 to vector<1x128xf32>
    %282 = arith.addf %281, %280 : vector<1x128xf32>
    %283 = arith.divf %281, %282 : vector<1x128xf32>
    %284 = vector.extract_strided_slice %265 {offsets = [0, 256], sizes = [1, 128], strides = [1, 1]} : vector<1x384xf32> to vector<1x128xf32>
    %285 = vector.extract_strided_slice %267 {offsets = [0, 256], sizes = [1, 128], strides = [1, 1]} : vector<1x384xf32> to vector<1x128xf32>
    %286 = arith.mulf %275, %285 : vector<1x128xf32>
    %287 = arith.addf %284, %286 : vector<1x128xf32>
    %288 = math.tanh %287 : vector<1x128xf32>
    %cst_59 = arith.constant 1.000000e+00 : f32
    %289 = vector.broadcast %cst_59 : f32 to vector<1x128xf32>
    %290 = arith.subf %289, %283 : vector<1x128xf32>
    %291 = arith.mulf %290, %288 : vector<1x128xf32>
    %292 = arith.mulf %283, %235 : vector<1x128xf32>
    %293 = arith.addf %291, %292 : vector<1x128xf32>
    %294 = vector.extract_strided_slice %25 {offsets = [5, 0], sizes = [1, 384], strides = [1, 1]} : vector<8x384xf32> to vector<1x384xf32>
    %cst_60 = arith.constant dense<0.000000e+00> : vector<1x384xf32>
    %295 = tpu.matmul %293, %27, %cst_60 {dimension_numbers = #tpu.dot_dimension_numbers<[1], [0], [0], [1], [0, 0, 1, 1], [], []>} : vector<1x128xf32>, vector<128x384xf32>, vector<1x384xf32> -> vector<1x384xf32>
    %296 = arith.addf %295, %28 : vector<1x384xf32>
    %297 = vector.extract_strided_slice %294 {offsets = [0, 0], sizes = [1, 128], strides = [1, 1]} : vector<1x384xf32> to vector<1x128xf32>
    %298 = vector.extract_strided_slice %296 {offsets = [0, 0], sizes = [1, 128], strides = [1, 1]} : vector<1x384xf32> to vector<1x128xf32>
    %299 = arith.addf %297, %298 : vector<1x128xf32>
    %300 = arith.negf %299 : vector<1x128xf32>
    %301 = math.exp %300 : vector<1x128xf32>
    %cst_61 = arith.constant 1.000000e+00 : f32
    %302 = vector.broadcast %cst_61 : f32 to vector<1x128xf32>
    %303 = arith.addf %302, %301 : vector<1x128xf32>
    %304 = arith.divf %302, %303 : vector<1x128xf32>
    %305 = vector.extract_strided_slice %294 {offsets = [0, 128], sizes = [1, 128], strides = [1, 1]} : vector<1x384xf32> to vector<1x128xf32>
    %306 = vector.extract_strided_slice %296 {offsets = [0, 128], sizes = [1, 128], strides = [1, 1]} : vector<1x384xf32> to vector<1x128xf32>
    %307 = arith.addf %305, %306 : vector<1x128xf32>
    %308 = arith.negf %307 : vector<1x128xf32>
    %309 = math.exp %308 : vector<1x128xf32>
    %cst_62 = arith.constant 1.000000e+00 : f32
    %310 = vector.broadcast %cst_62 : f32 to vector<1x128xf32>
    %311 = arith.addf %310, %309 : vector<1x128xf32>
    %312 = arith.divf %310, %311 : vector<1x128xf32>
    %313 = vector.extract_strided_slice %294 {offsets = [0, 256], sizes = [1, 128], strides = [1, 1]} : vector<1x384xf32> to vector<1x128xf32>
    %314 = vector.extract_strided_slice %296 {offsets = [0, 256], sizes = [1, 128], strides = [1, 1]} : vector<1x384xf32> to vector<1x128xf32>
    %315 = arith.mulf %304, %314 : vector<1x128xf32>
    %316 = arith.addf %313, %315 : vector<1x128xf32>
    %317 = math.tanh %316 : vector<1x128xf32>
    %cst_63 = arith.constant 1.000000e+00 : f32
    %318 = vector.broadcast %cst_63 : f32 to vector<1x128xf32>
    %319 = arith.subf %318, %312 : vector<1x128xf32>
    %320 = arith.mulf %319, %317 : vector<1x128xf32>
    %321 = arith.mulf %312, %293 : vector<1x128xf32>
    %322 = arith.addf %320, %321 : vector<1x128xf32>
    %323 = vector.extract_strided_slice %25 {offsets = [6, 0], sizes = [1, 384], strides = [1, 1]} : vector<8x384xf32> to vector<1x384xf32>
    %cst_64 = arith.constant dense<0.000000e+00> : vector<1x384xf32>
    %324 = tpu.matmul %322, %27, %cst_64 {dimension_numbers = #tpu.dot_dimension_numbers<[1], [0], [0], [1], [0, 0, 1, 1], [], []>} : vector<1x128xf32>, vector<128x384xf32>, vector<1x384xf32> -> vector<1x384xf32>
    %325 = arith.addf %324, %28 : vector<1x384xf32>
    %326 = vector.extract_strided_slice %323 {offsets = [0, 0], sizes = [1, 128], strides = [1, 1]} : vector<1x384xf32> to vector<1x128xf32>
    %327 = vector.extract_strided_slice %325 {offsets = [0, 0], sizes = [1, 128], strides = [1, 1]} : vector<1x384xf32> to vector<1x128xf32>
    %328 = arith.addf %326, %327 : vector<1x128xf32>
    %329 = arith.negf %328 : vector<1x128xf32>
    %330 = math.exp %329 : vector<1x128xf32>
    %cst_65 = arith.constant 1.000000e+00 : f32
    %331 = vector.broadcast %cst_65 : f32 to vector<1x128xf32>
    %332 = arith.addf %331, %330 : vector<1x128xf32>
    %333 = arith.divf %331, %332 : vector<1x128xf32>
    %334 = vector.extract_strided_slice %323 {offsets = [0, 128], sizes = [1, 128], strides = [1, 1]} : vector<1x384xf32> to vector<1x128xf32>
    %335 = vector.extract_strided_slice %325 {offsets = [0, 128], sizes = [1, 128], strides = [1, 1]} : vector<1x384xf32> to vector<1x128xf32>
    %336 = arith.addf %334, %335 : vector<1x128xf32>
    %337 = arith.negf %336 : vector<1x128xf32>
    %338 = math.exp %337 : vector<1x128xf32>
    %cst_66 = arith.constant 1.000000e+00 : f32
    %339 = vector.broadcast %cst_66 : f32 to vector<1x128xf32>
    %340 = arith.addf %339, %338 : vector<1x128xf32>
    %341 = arith.divf %339, %340 : vector<1x128xf32>
    %342 = vector.extract_strided_slice %323 {offsets = [0, 256], sizes = [1, 128], strides = [1, 1]} : vector<1x384xf32> to vector<1x128xf32>
    %343 = vector.extract_strided_slice %325 {offsets = [0, 256], sizes = [1, 128], strides = [1, 1]} : vector<1x384xf32> to vector<1x128xf32>
    %344 = arith.mulf %333, %343 : vector<1x128xf32>
    %345 = arith.addf %342, %344 : vector<1x128xf32>
    %346 = math.tanh %345 : vector<1x128xf32>
    %cst_67 = arith.constant 1.000000e+00 : f32
    %347 = vector.broadcast %cst_67 : f32 to vector<1x128xf32>
    %348 = arith.subf %347, %341 : vector<1x128xf32>
    %349 = arith.mulf %348, %346 : vector<1x128xf32>
    %350 = arith.mulf %341, %322 : vector<1x128xf32>
    %351 = arith.addf %349, %350 : vector<1x128xf32>
    %352 = vector.extract_strided_slice %25 {offsets = [7, 0], sizes = [1, 384], strides = [1, 1]} : vector<8x384xf32> to vector<1x384xf32>
    %cst_68 = arith.constant dense<0.000000e+00> : vector<1x384xf32>
    %353 = tpu.matmul %351, %27, %cst_68 {dimension_numbers = #tpu.dot_dimension_numbers<[1], [0], [0], [1], [0, 0, 1, 1], [], []>} : vector<1x128xf32>, vector<128x384xf32>, vector<1x384xf32> -> vector<1x384xf32>
    %354 = arith.addf %353, %28 : vector<1x384xf32>
    %355 = vector.extract_strided_slice %352 {offsets = [0, 0], sizes = [1, 128], strides = [1, 1]} : vector<1x384xf32> to vector<1x128xf32>
    %356 = vector.extract_strided_slice %354 {offsets = [0, 0], sizes = [1, 128], strides = [1, 1]} : vector<1x384xf32> to vector<1x128xf32>
    %357 = arith.addf %355, %356 : vector<1x128xf32>
    %358 = arith.negf %357 : vector<1x128xf32>
    %359 = math.exp %358 : vector<1x128xf32>
    %cst_69 = arith.constant 1.000000e+00 : f32
    %360 = vector.broadcast %cst_69 : f32 to vector<1x128xf32>
    %361 = arith.addf %360, %359 : vector<1x128xf32>
    %362 = arith.divf %360, %361 : vector<1x128xf32>
    %363 = vector.extract_strided_slice %352 {offsets = [0, 128], sizes = [1, 128], strides = [1, 1]} : vector<1x384xf32> to vector<1x128xf32>
    %364 = vector.extract_strided_slice %354 {offsets = [0, 128], sizes = [1, 128], strides = [1, 1]} : vector<1x384xf32> to vector<1x128xf32>
    %365 = arith.addf %363, %364 : vector<1x128xf32>
    %366 = arith.negf %365 : vector<1x128xf32>
    %367 = math.exp %366 : vector<1x128xf32>
    %cst_70 = arith.constant 1.000000e+00 : f32
    %368 = vector.broadcast %cst_70 : f32 to vector<1x128xf32>
    %369 = arith.addf %368, %367 : vector<1x128xf32>
    %370 = arith.divf %368, %369 : vector<1x128xf32>
    %371 = vector.extract_strided_slice %352 {offsets = [0, 256], sizes = [1, 128], strides = [1, 1]} : vector<1x384xf32> to vector<1x128xf32>
    %372 = vector.extract_strided_slice %354 {offsets = [0, 256], sizes = [1, 128], strides = [1, 1]} : vector<1x384xf32> to vector<1x128xf32>
    %373 = arith.mulf %362, %372 : vector<1x128xf32>
    %374 = arith.addf %371, %373 : vector<1x128xf32>
    %375 = math.tanh %374 : vector<1x128xf32>
    %cst_71 = arith.constant 1.000000e+00 : f32
    %376 = vector.broadcast %cst_71 : f32 to vector<1x128xf32>
    %377 = arith.subf %376, %370 : vector<1x128xf32>
    %378 = arith.mulf %377, %375 : vector<1x128xf32>
    %379 = arith.mulf %370, %351 : vector<1x128xf32>
    %380 = arith.addf %378, %379 : vector<1x128xf32>
    %381 = tpu.concatenate %61, %119, %177, %235, %293, %322, %351, %380 in 0 : vector<1x128xf32>, vector<1x128xf32>, vector<1x128xf32>, vector<1x128xf32>, vector<1x128xf32>, vector<1x128xf32>, vector<1x128xf32>, vector<1x128xf32> -> vector<8x128xf32>
    %cst_72 = arith.constant 0.000000e+00 : f32
    %382 = vector.broadcast %cst_72 : f32 to vector<4x128xf32>
    %383 = tpu.concatenate %90, %148, %206, %264, %382 in 0 : vector<1x128xf32>, vector<1x128xf32>, vector<1x128xf32>, vector<1x128xf32>, vector<4x128xf32> -> vector<8x128xf32>
    %cst_73 = arith.constant dense<0.000000e+00> : vector<8x8xf32>
    %384 = tpu.matmul %383, %381, %cst_73 {dimension_numbers = #tpu.dot_dimension_numbers<[1], [1], [0], [0], [0, 0, 1, 0], [], []>} : vector<8x128xf32>, vector<8x128xf32>, vector<8x8xf32> -> vector<8x8xf32>
    %cst_74 = arith.constant dense<0xFF800000> : vector<8xf32>
    %385 = vector.multi_reduction <maximumf>, %384, %cst_74 [1] : vector<8x8xf32> to vector<8xf32>
    %386 = vector.shape_cast %385 : vector<8xf32> to vector<8x1xf32>
    %387 = vector.broadcast %386 : vector<8x1xf32> to vector<8x8xf32>
    %388 = arith.subf %384, %387 : vector<8x8xf32>
    %389 = math.exp %388 : vector<8x8xf32>
    %cst_75 = arith.constant dense<0.000000e+00> : vector<8xf32>
    %390 = vector.multi_reduction <add>, %389, %cst_75 [1] : vector<8x8xf32> to vector<8xf32>
    %391 = vector.shape_cast %390 : vector<8xf32> to vector<8x1xf32>
    %392 = vector.broadcast %391 : vector<8x1xf32> to vector<8x8xf32>
    %393 = arith.divf %389, %392 : vector<8x8xf32>
    %cst_76 = arith.constant dense<0.000000e+00> : vector<8x128xf32>
    %394 = tpu.matmul %393, %381, %cst_76 {dimension_numbers = #tpu.dot_dimension_numbers<[1], [0], [0], [1], [0, 0, 1, 1], [], []>} : vector<8x8xf32>, vector<8x128xf32>, vector<8x128xf32> -> vector<8x128xf32>
    %c0_77 = arith.constant 0 : index
    %c0_78 = arith.constant 0 : index
    %395 = vector.load %arg10[%c0_77, %c0_78] : memref<128x128xf32, #tpu.memory_space<vmem>>, vector<128x128xf32>
    %cst_79 = arith.constant dense<0.000000e+00> : vector<8x128xf32>
    %396 = tpu.matmul %383, %395, %cst_79 {dimension_numbers = #tpu.dot_dimension_numbers<[1], [0], [0], [1], [0, 0, 1, 1], [], []>} : vector<8x128xf32>, vector<128x128xf32>, vector<8x128xf32> -> vector<8x128xf32>
    %c0_80 = arith.constant 0 : index
    %c0_81 = arith.constant 0 : index
    %397 = vector.load %arg11[%c0_80, %c0_81] : memref<128x128xf32, #tpu.memory_space<vmem>>, vector<128x128xf32>
    %cst_82 = arith.constant dense<0.000000e+00> : vector<8x128xf32>
    %398 = tpu.matmul %394, %397, %cst_82 {dimension_numbers = #tpu.dot_dimension_numbers<[1], [0], [0], [1], [0, 0, 1, 1], [], []>} : vector<8x128xf32>, vector<128x128xf32>, vector<8x128xf32> -> vector<8x128xf32>
    %399 = arith.addf %396, %398 : vector<8x128xf32>
    %c0_83 = arith.constant 0 : index
    %c0_84 = arith.constant 0 : index
    %400 = vector.load %arg12[%c0_83, %c0_84] : memref<1x128xf32, #tpu.memory_space<vmem>>, vector<1x128xf32>
    %401 = vector.broadcast %400 : vector<1x128xf32> to vector<8x128xf32>
    %402 = arith.addf %399, %401 : vector<8x128xf32>
    %403 = tpu.iota {dimensions = array<i32: 1>} : vector<8x128xi32>
    %c100_i32 = arith.constant 100 : i32
    %404 = vector.broadcast %c100_i32 : i32 to vector<8x128xi32>
    %405 = arith.cmpi slt, %403, %404 : vector<8x128xi32>
    %cst_85 = arith.constant -1.000000e+30 : f32
    %406 = vector.broadcast %cst_85 : f32 to vector<8x128xf32>
    %407 = arith.select %405, %402, %406 : vector<8x128xi1>, vector<8x128xf32>
    %cst_86 = arith.constant dense<0xFF800000> : vector<8xf32>
    %408 = vector.multi_reduction <maximumf>, %407, %cst_86 [1] : vector<8x128xf32> to vector<8xf32>
    %409 = vector.shape_cast %408 : vector<8xf32> to vector<8x1xf32>
    %410 = vector.broadcast %409 : vector<8x1xf32> to vector<8x128xf32>
    %411 = arith.subf %407, %410 : vector<8x128xf32>
    %412 = math.exp %411 : vector<8x128xf32>
    %cst_87 = arith.constant dense<0.000000e+00> : vector<8xf32>
    %413 = vector.multi_reduction <add>, %412, %cst_87 [1] : vector<8x128xf32> to vector<8xf32>
    %414 = vector.shape_cast %413 : vector<8xf32> to vector<8x1xf32>
    %415 = math.log %414 : vector<8x1xf32>
    %416 = vector.broadcast %415 : vector<8x1xf32> to vector<8x128xf32>
    %417 = arith.subf %411, %416 : vector<8x128xf32>
    %c0_88 = arith.constant 0 : index
    %c0_89 = arith.constant 0 : index
    %418 = vector.load %arg13[%c0_88, %c0_89] : memref<8x128xf32, #tpu.memory_space<vmem>>, vector<8x128xf32>
    tpu.vector_store %arg13[%c0_88, %c0_89], %417 {strides = array<i32>} : memref<8x128xf32, #tpu.memory_space<vmem>>, vector<8x128xf32>,
    return
  }
}

</mosaic_0001>

<llo_original>
// kernel: forward.1
$region0: #{forward.1}
  #allocation0 [shape = 'u32[]', space=smem, size = 0x4, offset = 0x4, fixed_abs, tag = 'smem constant byte address 0x4 - core index']
  #allocation1 [shape = 'u32[72,128]{1,0:T(1,128)}', space=vmem, size = 0x9000, scoped, tag = 'internal scratch']
  %s0 = inlined_call_operand.vmem [shape: s32[12,1], index: 0, kind: input, shape index: {}]
  %s1 = inlined_call_operand.vmem [shape: s32[12,1], index: 1, kind: input, shape index: {}]
  %s2 = inlined_call_operand.vmem [shape: f32[128,16], index: 2, kind: input, shape index: {}]
  %s3 = inlined_call_operand.vmem [shape: f32[128,16], index: 3, kind: input, shape index: {}]
  %s4 = inlined_call_operand.vmem [shape: f32[32,768], index: 4, kind: input, shape index: {}]
  %s5 = inlined_call_operand.vmem [shape: f32[1,768], index: 5, kind: input, shape index: {}]
  %s6 = inlined_call_operand.hbm [shape: f32[128,384], index: 6, kind: input, shape index: {}]
  %s7 = inlined_call_operand.vmem [shape: f32[1,384], index: 7, kind: input, shape index: {}]
  %s8 = inlined_call_operand.hbm [shape: f32[128,384], index: 8, kind: input, shape index: {}]
  %s9 = inlined_call_operand.vmem [shape: f32[1,384], index: 9, kind: input, shape index: {}]
  %s10 = inlined_call_operand.hbm [shape: f32[128,128], index: 10, kind: input, shape index: {}]
  %s11 = inlined_call_operand.hbm [shape: f32[128,128], index: 11, kind: input, shape index: {}]
  %s12 = inlined_call_operand.vmem [shape: f32[1,128], index: 12, kind: input, shape index: {}]
  %s13 = inlined_call_operand.vmem [shape: f32[8,128], index: 13, kind: output, shape index: {}]
  %s14 = sld [smem:[#allocation0]]
  $region78: #{forward.1} parent=0
    _
  %s16 = ssub.s32 1, %s14
  %s17 = scalar_select 0, %s16, %s14
  $region1: #{forward.1} parent=0
    #allocation2 [shape = 'u8[196608]{0}', space=vmem, size = 0x30000, scoped, tag = 'input window, operand 6, single buffered']
    #allocation3 [shape = 's32[1]{0}', space=sflag, size = 0x4, scoped, tag = 'scoped memory for forward.1']
    #allocation4 [shape = 'u8[196608]{0}', space=vmem, size = 0x30000, scoped, tag = 'input window, operand 8, single buffered']
    #allocation5 [shape = 's32[1]{0}', space=sflag, size = 0x4, scoped, tag = 'scoped memory for forward.1']
    #allocation6 [shape = 'u8[65536]{0}', space=vmem, size = 0x10000, scoped, tag = 'input window, operand 10, single buffered']
    #allocation7 [shape = 'u8[65536]{0}', space=vmem, size = 0x10000, scoped, tag = 'input window, operand 11, single buffered']
    #allocation8 [shape = 's32[1]{0}', space=sflag, size = 0x4, scoped, tag = 'scoped memory for forward.1']
    %18 = vsyncpa [#allocation3], 0
    %19 = vsyncpa [#allocation5], 0
    %20 = vsyncpa [#allocation8], 0
    // Predicated region
    $region2: #{forward.1} parent=1 // pred_check
      _
    $region3: #{forward.1} parent=1 // pred_check_branch
      %22 = sbr.rel (0) target = $region5
    $region4: #{forward.1} parent=1 // pred_region
      _
    $region5: #{forward.1} parent=1 // pred_fallthru
      _
    // Predicated region
    $region6: #{forward.1} parent=1 // pred_check
      _
    $region7: #{forward.1} parent=1 // pred_check_branch
      %24 = sbr.rel (0) target = $region9
    $region8: #{forward.1} parent=1 // pred_region
      _
    $region9: #{forward.1} parent=1 // pred_fallthru
      _
    // Predicated region
    $region10: #{forward.1} parent=1 // pred_check
      _
    $region11: #{forward.1} parent=1 // pred_check_branch
      %26 = sbr.rel (0) target = $region13
    $region12: #{forward.1} parent=1 // pred_region
      _
    $region13: #{forward.1} parent=1 // pred_fallthru
      _
    // Predicated region
    $region14: #{forward.1} parent=1 // pred_check
      _
    $region15: #{forward.1} parent=1 // pred_check_branch
      %28 = sbr.rel (0) target = $region17
    $region16: #{forward.1} parent=1 // pred_region
      _
    $region17: #{forward.1} parent=1 // pred_fallthru
      _
    // Predicated region
    $region18: #{forward.1} parent=1 // pred_check
      _
    $region19: #{forward.1} parent=1 // pred_check_branch
      %30 = sbr.rel (0) target = $region21
    $region20: #{forward.1} parent=1 // pred_region
      _
    $region21: #{forward.1} parent=1 // pred_fallthru
      _
    // Predicated region
    $region22: #{forward.1} parent=1 // pred_check
      _
    $region23: #{forward.1} parent=1 // pred_check_branch
      %32 = sbr.rel (0) target = $region25
    $region24: #{forward.1} parent=1 // pred_region
      _
    $region25: #{forward.1} parent=1 // pred_fallthru
      _
    // Predicated region
    $region26: #{forward.1} parent=1 // pred_check
      _
    $region27: #{forward.1} parent=1 // pred_check_branch
      %34 = sbr.rel (0) target = $region29
    $region28: #{forward.1} parent=1 // pred_region
      %36 = vsyncadd [#allocation3], 0
      %s37 = sshll.u32 %s6, 4
      %s38 = int_to_ptr.hbm [resolvable:$true] %s37
      %s39 = sshll.u32 [#allocation2], 4
      %s40 = int_to_ptr.vmem [resolvable:$true] %s39
      %45 = dma.hbm_to_vmem [thread:$0]  %s38, 6144, %s40, [#allocation3], 384, 384, 24
    $region29: #{forward.1} parent=1 // pred_fallthru
      _
    // Predicated region
    $region30: #{forward.1} parent=1 // pred_check
      _
    $region31: #{forward.1} parent=1 // pred_check_branch
      %47 = sbr.rel (0) target = $region33
    $region32: #{forward.1} parent=1 // pred_region
      _
    $region33: #{forward.1} parent=1 // pred_fallthru
      _
    // Predicated region
    $region34: #{forward.1} parent=1 // pred_check
      _
    $region35: #{forward.1} parent=1 // pred_check_branch
      %49 = sbr.rel (0) target = $region37
    $region36: #{forward.1} parent=1 // pred_region
      %51 = vsyncadd [#allocation5], 0
      %s52 = sshll.u32 %s8, 4
      %s53 = int_to_ptr.hbm [resolvable:$true] %s52
      %s54 = sshll.u32 [#allocation4], 4
      %s55 = int_to_ptr.vmem [resolvable:$true] %s54
      %60 = dma.hbm_to_vmem [thread:$0]  %s53, 6144, %s55, [#allocation5], 384, 384, 24
    $region37: #{forward.1} parent=1 // pred_fallthru
      _
    // Predicated region
    $region38: #{forward.1} parent=1 // pred_check
      _
    $region39: #{forward.1} parent=1 // pred_check_branch
      %62 = sbr.rel (0) target = $region41
    $region40: #{forward.1} parent=1 // pred_region
      _
    $region41: #{forward.1} parent=1 // pred_fallthru
      _
    // Predicated region
    $region42: #{forward.1} parent=1 // pred_check
      _
    $region43: #{forward.1} parent=1 // pred_check_branch
      %64 = sbr.rel (0) target = $region45
    $region44: #{forward.1} parent=1 // pred_region
      %66 = vsyncadd [#allocation5], 0
      %s67 = sshll.u32 %s10, 4
      %s68 = int_to_ptr.hbm [resolvable:$true] %s67
      %s69 = sshll.u32 [#allocation6], 4
      %s70 = int_to_ptr.vmem [resolvable:$true] %s69
      %75 = dma.hbm_to_vmem [thread:$0]  %s68, 2048, %s70, [#allocation5], 128, 128, 8
    $region45: #{forward.1} parent=1 // pred_fallthru
      _
    // Predicated region
    $region46: #{forward.1} parent=1 // pred_check
      _
    $region47: #{forward.1} parent=1 // pred_check_branch
      %77 = sbr.rel (0) target = $region49
    $region48: #{forward.1} parent=1 // pred_region
      %79 = vsyncadd [#allocation8], 0
      %s80 = sshll.u32 %s11, 4
      %s81 = int_to_ptr.hbm [resolvable:$true] %s80
      %s82 = sshll.u32 [#allocation7], 4
      %s83 = int_to_ptr.vmem [resolvable:$true] %s82
      %88 = dma.hbm_to_vmem [thread:$0]  %s81, 2048, %s83, [#allocation8], 128, 128, 8
    $region49: #{forward.1} parent=1 // pred_fallthru
      _
    // Predicated region
    $region50: #{forward.1} parent=1 // pred_check
      _
    $region51: #{forward.1} parent=1 // pred_check_branch
      %90 = sbr.rel (0) target = $region53
    $region52: #{forward.1} parent=1 // pred_region
      _
    $region53: #{forward.1} parent=1 // pred_fallthru
      _
    // Predicated region
    $region54: #{forward.1} parent=1 // pred_check
      _
    $region55: #{forward.1} parent=1 // pred_check_branch
      %92 = sbr.rel (0) target = $region57
    $region56: #{forward.1} parent=1 // pred_region
      %94 = dma.done [#allocation3], 6144
    $region57: #{forward.1} parent=1 // pred_fallthru
      _
    // Predicated region
    $region58: #{forward.1} parent=1 // pred_check
      _
    $region59: #{forward.1} parent=1 // pred_check_branch
      %96 = sbr.rel (0) target = $region61
    $region60: #{forward.1} parent=1 // pred_region
      %98 = dma.done [#allocation5], 6144
    $region61: #{forward.1} parent=1 // pred_fallthru
      _
    // Predicated region
    $region62: #{forward.1} parent=1 // pred_check
      _
    $region63: #{forward.1} parent=1 // pred_check_branch
      %100 = sbr.rel (0) target = $region65
    $region64: #{forward.1} parent=1 // pred_region
      %102 = dma.done [#allocation5], 2048
    $region65: #{forward.1} parent=1 // pred_fallthru
      _
    // Predicated region
    $region66: #{forward.1} parent=1 // pred_check
      _
    $region67: #{forward.1} parent=1 // pred_check_branch
      %104 = sbr.rel (0) target = $region69
    $region68: #{forward.1} parent=1 // pred_region
      %106 = dma.done [#allocation8], 2048
    $region69: #{forward.1} parent=1 // pred_fallthru
      _
    %v107 = vld [vmem:[%s0] sm:$0xff]
    %v108 = vld [vmem:[%s0 + $0x8] sm:$0xf]
    %v109 = vld [vmem:[%s1] sm:$0xff]
    %v110 = vld [vmem:[%s1 + $0x8] sm:$0xf]
    %v111 = vlaneseq
    %v112 = vand.u32 %v111, 127
    %113 = vset.pattern.permute.xlu0 0
    %114 = vperm.xlu0 %113, %v107
    %v115 = vpop.permute.xlu0 %114
    %116 = vset.pattern.permute.xlu0 0
    %117 = vperm.xlu0 %116, %v108
    %v118 = vpop.permute.xlu0 %117
    %vm119 = vcmp.eq.s32.totalorder %v112, %v115
    %vm120 = vcmp.eq.s32.totalorder %v112, %v118
    %v121 = vsel %vm119, 1, 0
    %v122 = vsel %vm120, 1, 0
    %v123 = vcvt.s32.f32 %v121
    %v124 = vcvt.s32.f32 %v122
    %125 = vset.pattern.permute.xlu0 0
    %126 = vperm.xlu0 %125, %v109
    %v127 = vpop.permute.xlu0 %126
    %128 = vset.pattern.permute.xlu0 0
    %129 = vperm.xlu0 %128, %v110
    %v130 = vpop.permute.xlu0 %129
    %vm131 = vcmp.eq.s32.totalorder %v112, %v127
    %vm132 = vcmp.eq.s32.totalorder %v112, %v130
    %v133 = vsel %vm131, 1, 0
    %v134 = vsel %vm132, 1, 0
    %v135 = vcvt.s32.f32 %v133
    %v136 = vcvt.s32.f32 %v134
    %v137 = vld [vmem:[%s2] sm:$0xff]
    %v138 = vld [vmem:[%s2 + $0x8] sm:$0xff]
    %v139 = vld [vmem:[%s2 + $0x10] sm:$0xff]
    %v140 = vld [vmem:[%s2 + $0x18] sm:$0xff]
    %v141 = vld [vmem:[%s2 + $0x20] sm:$0xff]
    %v142 = vld [vmem:[%s2 + $0x28] sm:$0xff]
    %v143 = vld [vmem:[%s2 + $0x30] sm:$0xff]
    %v144 = vld [vmem:[%s2 + $0x38] sm:$0xff]
    %v145 = vld [vmem:[%s2 + $0x40] sm:$0xff]
    %v146 = vld [vmem:[%s2 + $0x48] sm:$0xff]
    %v147 = vld [vmem:[%s2 + $0x50] sm:$0xff]
    %v148 = vld [vmem:[%s2 + $0x58] sm:$0xff]
    %v149 = vld [vmem:[%s2 + $0x60] sm:$0xff]
    %v150 = vld [vmem:[%s2 + $0x68] sm:$0xff]
    %v151 = vld [vmem:[%s2 + $0x70] sm:$0xff]
    %v152 = vld [vmem:[%s2 + $0x78] sm:$0xff]
    %153 = vmatpush.msra.mxu0 %v152
    %154 = vmatpush.msra.mxu0 %v151
    %155 = vmatpush.msra.mxu0 %v150
    %156 = vmatpush.msra.mxu0 %v149
    %157 = vmatpush.msra.mxu0 %v148
    %158 = vmatpush.msra.mxu0 %v147
    %159 = vmatpush.msra.mxu0 %v146
    %160 = vmatpush.msra.mxu0 %v145
    %161 = vmatpush.msra.mxu0 %v144
    %162 = vmatpush.msra.mxu0 %v143
    %163 = vmatpush.msra.mxu0 %v142
    %164 = vmatpush.msra.mxu0 %v141
    %165 = vmatpush.msra.mxu0 %v140
    %166 = vmatpush.msra.mxu0 %v139
    %167 = vmatpush.msra.mxu0 %v138
    %168 = vmatpush.msra.mxu0 %v137
    %169 = vmatmul.f32.gmra.mxu0 %v123
    %v170 = vpop.f32.mrf.mxu0
    %v171 = vadd.f32 0.0, %v170
    %172 = vmatmul.f32.gmra.mxu0 %v124
    %v173 = vpop.f32.mrf.mxu0
    %v174 = vadd.f32 0.0, %v173
    %175 = vdwg.mxu0
    %v176 = vld [vmem:[%s3] sm:$0xff]
    %v177 = vld [vmem:[%s3 + $0x8] sm:$0xff]
    %v178 = vld [vmem:[%s3 + $0x10] sm:$0xff]
    %v179 = vld [vmem:[%s3 + $0x18] sm:$0xff]
    %v180 = vld [vmem:[%s3 + $0x20] sm:$0xff]
    %v181 = vld [vmem:[%s3 + $0x28] sm:$0xff]
    %v182 = vld [vmem:[%s3 + $0x30] sm:$0xff]
    %v183 = vld [vmem:[%s3 + $0x38] sm:$0xff]
    %v184 = vld [vmem:[%s3 + $0x40] sm:$0xff]
    %v185 = vld [vmem:[%s3 + $0x48] sm:$0xff]
    %v186 = vld [vmem:[%s3 + $0x50] sm:$0xff]
    %v187 = vld [vmem:[%s3 + $0x58] sm:$0xff]
    %v188 = vld [vmem:[%s3 + $0x60] sm:$0xff]
    %v189 = vld [vmem:[%s3 + $0x68] sm:$0xff]
    %v190 = vld [vmem:[%s3 + $0x70] sm:$0xff]
    %v191 = vld [vmem:[%s3 + $0x78] sm:$0xff]
    %192 = vmatpush.msra.mxu0 %v191
    %193 = vmatpush.msra.mxu0 %v190
    %194 = vmatpush.msra.mxu0 %v189
    %195 = vmatpush.msra.mxu0 %v188
    %196 = vmatpush.msra.mxu0 %v187
    %197 = vmatpush.msra.mxu0 %v186
    %198 = vmatpush.msra.mxu0 %v185
    %199 = vmatpush.msra.mxu0 %v184
    %200 = vmatpush.msra.mxu0 %v183
    %201 = vmatpush.msra.mxu0 %v182
    %202 = vmatpush.msra.mxu0 %v181
    %203 = vmatpush.msra.mxu0 %v180
    %204 = vmatpush.msra.mxu0 %v179
    %205 = vmatpush.msra.mxu0 %v178
    %206 = vmatpush.msra.mxu0 %v177
    %207 = vmatpush.msra.mxu0 %v176
    %208 = vmatmul.f32.gmra.mxu0 %v135
    %v209 = vpop.f32.mrf.mxu0
    %v210 = vadd.f32 0.0, %v209
    %211 = vmatmul.f32.gmra.mxu0 %v136
    %v212 = vpop.f32.mrf.mxu0
    %v213 = vadd.f32 0.0, %v212
    %214 = vdwg.mxu0
    %v215 = vld [vmem:[%s4] sm:$0xff]
    %v216 = vld [vmem:[%s4 + $0x8] sm:$0xff]
    %v217 = vld [vmem:[%s4 + $0x10] sm:$0xff]
    %v218 = vld [vmem:[%s4 + $0x18] sm:$0xff]
    %v219 = vld [vmem:[%s4 + $0x20] sm:$0xff]
    %v220 = vld [vmem:[%s4 + $0x28] sm:$0xff]
    %v221 = vld [vmem:[%s4 + $0x30] sm:$0xff]
    %v222 = vld [vmem:[%s4 + $0x38] sm:$0xff]
    %v223 = vld [vmem:[%s4 + $0x40] sm:$0xff]
    %v224 = vld [vmem:[%s4 + $0x48] sm:$0xff]
    %v225 = vld [vmem:[%s4 + $0x50] sm:$0xff]
    %v226 = vld [vmem:[%s4 + $0x58] sm:$0xff]
    %v227 = vld [vmem:[%s4 + $0x60] sm:$0xff]
    %v228 = vld [vmem:[%s4 + $0x68] sm:$0xff]
    %v229 = vld [vmem:[%s4 + $0x70] sm:$0xff]
    %v230 = vld [vmem:[%s4 + $0x78] sm:$0xff]
    %v231 = vld [vmem:[%s4 + $0x80] sm:$0xff]
    %v232 = vld [vmem:[%s4 + $0x88] sm:$0xff]
    %v233 = vld [vmem:[%s4 + $0x90] sm:$0xff]
    %v234 = vld [vmem:[%s4 + $0x98] sm:$0xff]
    %v235 = vld [vmem:[%s4 + $0xa0] sm:$0xff]
    %v236 = vld [vmem:[%s4 + $0xa8] sm:$0xff]
    %v237 = vld [vmem:[%s4 + $0xb0] sm:$0xff]
    %v238 = vld [vmem:[%s4 + $0xb8] sm:$0xff]
    %vm239 = vcmask 130048
    %v241 = vsel %vm239, %v210, 0
    %v244 = vsel %vm239, %v213, 0
    %246 = vmatpush.msra.mxu0 0.0
    %247 = vmatpush.msra.mxu0 0.0
    %248 = vmatpush.msra.mxu0 0.0
    %249 = vmatpush.msra.mxu0 0.0
    %250 = vmatpush.msra.mxu0 0.0
    %251 = vmatpush.msra.mxu0 0.0
    %252 = vmatpush.msra.mxu0 0.0
    %253 = vmatpush.msra.mxu0 0.0
    %254 = vmatpush.msra.mxu0 0.0
    %255 = vmatpush.msra.mxu0 0.0
    %256 = vmatpush.msra.mxu0 0.0
    %257 = vmatpush.msra.mxu0 0.0
    %258 = vmatpush.msra.mxu0 0.0
    %259 = vmatpush.msra.mxu0 0.0
    %260 = vmatpush.msra.mxu0 %v233
    %261 = vmatpush.msra.mxu0 %v227
    %262 = vmatmul.f32.gmra.mxu0 %v241
    %v263 = vpop.f32.mrf.mxu0
    %v264 = vadd.f32 0.0, %v263
    %265 = vmatmul.f32.gmra.mxu0 %v244
    %v266 = vpop.f32.mrf.mxu0
    %267 = vdwg.mxu0
    %268 = vmatpush.msra.mxu0 0.0
    %269 = vmatpush.msra.mxu0 0.0
    %270 = vmatpush.msra.mxu0 0.0
    %271 = vmatpush.msra.mxu0 0.0
    %272 = vmatpush.msra.mxu0 0.0
    %273 = vmatpush.msra.mxu0 0.0
    %274 = vmatpush.msra.mxu0 0.0
    %275 = vmatpush.msra.mxu0 0.0
    %276 = vmatpush.msra.mxu0 0.0
    %277 = vmatpush.msra.mxu0 0.0
    %278 = vmatpush.msra.mxu0 0.0
    %279 = vmatpush.msra.mxu0 0.0
    %280 = vmatpush.msra.mxu0 0.0
    %281 = vmatpush.msra.mxu0 0.0
    %282 = vmatpush.msra.mxu0 %v234
    %283 = vmatpush.msra.mxu0 %v228
    %284 = vmatmul.f32.gmra.mxu0 %v241
    %v285 = vpop.f32.mrf.mxu0
    %v286 = vadd.f32 0.0, %v285
    %287 = vmatmul.f32.gmra.mxu0 %v244
    %v288 = vpop.f32.mrf.mxu0
    %289 = vdwg.mxu0
    %290 = vmatpush.msra.mxu0 0.0
    %291 = vmatpush.msra.mxu0 0.0
    %292 = vmatpush.msra.mxu0 0.0
    %293 = vmatpush.msra.mxu0 0.0
    %294 = vmatpush.msra.mxu0 0.0
    %295 = vmatpush.msra.mxu0 0.0
    %296 = vmatpush.msra.mxu0 0.0
    %297 = vmatpush.msra.mxu0 0.0
    %298 = vmatpush.msra.mxu0 0.0
    %299 = vmatpush.msra.mxu0 0.0
    %300 = vmatpush.msra.mxu0 0.0
    %301 = vmatpush.msra.mxu0 0.0
    %302 = vmatpush.msra.mxu0 0.0
    %303 = vmatpush.msra.mxu0 0.0
    %304 = vmatpush.msra.mxu0 %v235
    %305 = vmatpush.msra.mxu0 %v229
    %306 = vmatmul.f32.gmra.mxu0 %v241
    %v307 = vpop.f32.mrf.mxu0
    %v308 = vadd.f32 0.0, %v307
    %309 = vmatmul.f32.gmra.mxu0 %v244
    %v310 = vpop.f32.mrf.mxu0
    %311 = vdwg.mxu0
    %312 = vmatpush.msra.mxu0 0.0
    %313 = vmatpush.msra.mxu0 0.0
    %314 = vmatpush.msra.mxu0 0.0
    %315 = vmatpush.msra.mxu0 0.0
    %316 = vmatpush.msra.mxu0 0.0
    %317 = vmatpush.msra.mxu0 0.0
    %318 = vmatpush.msra.mxu0 0.0
    %319 = vmatpush.msra.mxu0 0.0
    %320 = vmatpush.msra.mxu0 0.0
    %321 = vmatpush.msra.mxu0 0.0
    %322 = vmatpush.msra.mxu0 0.0
    %323 = vmatpush.msra.mxu0 0.0
    %324 = vmatpush.msra.mxu0 0.0
    %325 = vmatpush.msra.mxu0 0.0
    %326 = vmatpush.msra.mxu0 %v236
    %327 = vmatpush.msra.mxu0 %v230
    %328 = vmatmul.f32.gmra.mxu0 %v241
    %v329 = vpop.f32.mrf.mxu0
    %330 = vmatmul.f32.gmra.mxu0 %v244
    %v331 = vpop.f32.mrf.mxu0
    %v332 = vadd.f32 0.0, %v331
    %333 = vdwg.mxu0
    %334 = vmatpush.msra.mxu0 0.0
    %335 = vmatpush.msra.mxu0 0.0
    %336 = vmatpush.msra.mxu0 0.0
    %337 = vmatpush.msra.mxu0 0.0
    %338 = vmatpush.msra.mxu0 0.0
    %339 = vmatpush.msra.mxu0 0.0
    %340 = vmatpush.msra.mxu0 0.0
    %341 = vmatpush.msra.mxu0 0.0
    %342 = vmatpush.msra.mxu0 0.0
    %343 = vmatpush.msra.mxu0 0.0
    %344 = vmatpush.msra.mxu0 0.0
    %345 = vmatpush.msra.mxu0 0.0
    %346 = vmatpush.msra.mxu0 0.0
    %347 = vmatpush.msra.mxu0 0.0
    %348 = vmatpush.msra.mxu0 %v237
    %349 = vmatpush.msra.mxu0 %v231
    %350 = vmatmul.f32.gmra.mxu0 %v241
    %v351 = vpop.f32.mrf.mxu0
    %352 = vmatmul.f32.gmra.mxu0 %v244
    %v353 = vpop.f32.mrf.mxu0
    %v354 = vadd.f32 0.0, %v353
    %355 = vdwg.mxu0
    %356 = vmatpush.msra.mxu0 0.0
    %357 = vmatpush.msra.mxu0 0.0
    %358 = vmatpush.msra.mxu0 0.0
    %359 = vmatpush.msra.mxu0 0.0
    %360 = vmatpush.msra.mxu0 0.0
    %361 = vmatpush.msra.mxu0 0.0
    %362 = vmatpush.msra.mxu0 0.0
    %363 = vmatpush.msra.mxu0 0.0
    %364 = vmatpush.msra.mxu0 0.0
    %365 = vmatpush.msra.mxu0 0.0
    %366 = vmatpush.msra.mxu0 0.0
    %367 = vmatpush.msra.mxu0 0.0
    %368 = vmatpush.msra.mxu0 0.0
    %369 = vmatpush.msra.mxu0 0.0
    %370 = vmatpush.msra.mxu0 %v238
    %371 = vmatpush.msra.mxu0 %v232
    %372 = vmatmul.f32.gmra.mxu0 %v241
    %v373 = vpop.f32.mrf.mxu0
    %374 = vmatmul.f32.gmra.mxu0 %v244
    %v375 = vpop.f32.mrf.mxu0
    %v376 = vadd.f32 0.0, %v375
    %377 = vdwg.mxu0
    %v379 = vsel %vm239, %v171, 0
    %v382 = vsel %vm239, %v174, 0
    %384 = vmatpush.msra.mxu0 0.0
    %385 = vmatpush.msra.mxu0 0.0
    %386 = vmatpush.msra.mxu0 0.0
    %387 = vmatpush.msra.mxu0 0.0
    %388 = vmatpush.msra.mxu0 0.0
    %389 = vmatpush.msra.mxu0 0.0
    %390 = vmatpush.msra.mxu0 0.0
    %391 = vmatpush.msra.mxu0 0.0
    %392 = vmatpush.msra.mxu0 0.0
    %393 = vmatpush.msra.mxu0 0.0
    %394 = vmatpush.msra.mxu0 0.0
    %395 = vmatpush.msra.mxu0 0.0
    %396 = vmatpush.msra.mxu0 0.0
    %397 = vmatpush.msra.mxu0 0.0
    %398 = vmatpush.msra.mxu0 %v221
    %399 = vmatpush.msra.mxu0 %v215
    %400 = vmatmul.f32.gmra.mxu0 %v379
    %v401 = vpop.f32.mrf.mxu0
    %v402 = vadd.f32 %v264, %v401
    %403 = vmatmul.f32.gmra.mxu0 %v382
    %v404 = vpop.f32.mrf.mxu0
    %405 = vdwg.mxu0
    %406 = vmatpush.msra.mxu0 0.0
    %407 = vmatpush.msra.mxu0 0.0
    %408 = vmatpush.msra.mxu0 0.0
    %409 = vmatpush.msra.mxu0 0.0
    %410 = vmatpush.msra.mxu0 0.0
    %411 = vmatpush.msra.mxu0 0.0
    %412 = vmatpush.msra.mxu0 0.0
    %413 = vmatpush.msra.mxu0 0.0
    %414 = vmatpush.msra.mxu0 0.0
    %415 = vmatpush.msra.mxu0 0.0
    %416 = vmatpush.msra.mxu0 0.0
    %417 = vmatpush.msra.mxu0 0.0
    %418 = vmatpush.msra.mxu0 0.0
    %419 = vmatpush.msra.mxu0 0.0
    %420 = vmatpush.msra.mxu0 %v222
    %421 = vmatpush.msra.mxu0 %v216
    %422 = vmatmul.f32.gmra.mxu0 %v379
    %v423 = vpop.f32.mrf.mxu0
    %v424 = vadd.f32 %v286, %v423
    %425 = vmatmul.f32.gmra.mxu0 %v382
    %v426 = vpop.f32.mrf.mxu0
    %427 = vdwg.mxu0
    %428 = vmatpush.msra.mxu0 0.0
    %429 = vmatpush.msra.mxu0 0.0
    %430 = vmatpush.msra.mxu0 0.0
    %431 = vmatpush.msra.mxu0 0.0
    %432 = vmatpush.msra.mxu0 0.0
    %433 = vmatpush.msra.mxu0 0.0
    %434 = vmatpush.msra.mxu0 0.0
    %435 = vmatpush.msra.mxu0 0.0
    %436 = vmatpush.msra.mxu0 0.0
    %437 = vmatpush.msra.mxu0 0.0
    %438 = vmatpush.msra.mxu0 0.0
    %439 = vmatpush.msra.mxu0 0.0
    %440 = vmatpush.msra.mxu0 0.0
    %441 = vmatpush.msra.mxu0 0.0
    %442 = vmatpush.msra.mxu0 %v223
    %443 = vmatpush.msra.mxu0 %v217
    %444 = vmatmul.f32.gmra.mxu0 %v379
    %v445 = vpop.f32.mrf.mxu0
    %v446 = vadd.f32 %v308, %v445
    %447 = vmatmul.f32.gmra.mxu0 %v382
    %v448 = vpop.f32.mrf.mxu0
    %449 = vdwg.mxu0
    %450 = vmatpush.msra.mxu0 0.0
    %451 = vmatpush.msra.mxu0 0.0
    %452 = vmatpush.msra.mxu0 0.0
    %453 = vmatpush.msra.mxu0 0.0
    %454 = vmatpush.msra.mxu0 0.0
    %455 = vmatpush.msra.mxu0 0.0
    %456 = vmatpush.msra.mxu0 0.0
    %457 = vmatpush.msra.mxu0 0.0
    %458 = vmatpush.msra.mxu0 0.0
    %459 = vmatpush.msra.mxu0 0.0
    %460 = vmatpush.msra.mxu0 0.0
    %461 = vmatpush.msra.mxu0 0.0
    %462 = vmatpush.msra.mxu0 0.0
    %463 = vmatpush.msra.mxu0 0.0
    %464 = vmatpush.msra.mxu0 %v224
    %465 = vmatpush.msra.mxu0 %v218
    %466 = vmatmul.f32.gmra.mxu0 %v379
    %v467 = vpop.f32.mrf.mxu0
    %468 = vmatmul.f32.gmra.mxu0 %v382
    %v469 = vpop.f32.mrf.mxu0
    %v470 = vadd.f32 %v332, %v469
    %471 = vdwg.mxu0
    %472 = vmatpush.msra.mxu0 0.0
    %473 = vmatpush.msra.mxu0 0.0
    %474 = vmatpush.msra.mxu0 0.0
    %475 = vmatpush.msra.mxu0 0.0
    %476 = vmatpush.msra.mxu0 0.0
    %477 = vmatpush.msra.mxu0 0.0
    %478 = vmatpush.msra.mxu0 0.0
    %479 = vmatpush.msra.mxu0 0.0
    %480 = vmatpush.msra.mxu0 0.0
    %481 = vmatpush.msra.mxu0 0.0
    %482 = vmatpush.msra.mxu0 0.0
    %483 = vmatpush.msra.mxu0 0.0
    %484 = vmatpush.msra.mxu0 0.0
    %485 = vmatpush.msra.mxu0 0.0
    %486 = vmatpush.msra.mxu0 %v225
    %487 = vmatpush.msra.mxu0 %v219
    %488 = vmatmul.f32.gmra.mxu0 %v379
    %v489 = vpop.f32.mrf.mxu0
    %490 = vmatmul.f32.gmra.mxu0 %v382
    %v491 = vpop.f32.mrf.mxu0
    %v492 = vadd.f32 %v354, %v491
    %493 = vdwg.mxu0
    %494 = vmatpush.msra.mxu0 0.0
    %495 = vmatpush.msra.mxu0 0.0
    %496 = vmatpush.msra.mxu0 0.0
    %497 = vmatpush.msra.mxu0 0.0
    %498 = vmatpush.msra.mxu0 0.0
    %499 = vmatpush.msra.mxu0 0.0
    %500 = vmatpush.msra.mxu0 0.0
    %501 = vmatpush.msra.mxu0 0.0
    %502 = vmatpush.msra.mxu0 0.0
    %503 = vmatpush.msra.mxu0 0.0
    %504 = vmatpush.msra.mxu0 0.0
    %505 = vmatpush.msra.mxu0 0.0
    %506 = vmatpush.msra.mxu0 0.0
    %507 = vmatpush.msra.mxu0 0.0
    %508 = vmatpush.msra.mxu0 %v226
    %509 = vmatpush.msra.mxu0 %v220
    %510 = vmatmul.f32.gmra.mxu0 %v379
    %v511 = vpop.f32.mrf.mxu0
    %512 = vmatmul.f32.gmra.mxu0 %v382
    %v513 = vpop.f32.mrf.mxu0
    %v514 = vadd.f32 %v376, %v513
    %515 = vdwg.mxu0
    %v516 = vld [vmem:[%s5] sm:$0x3f]
    %v518 = vperm.slane %v516, 0
    %v519 = vperm.slane %v516, 1
    %v520 = vperm.slane %v516, 2
    %v521 = vperm.slane %v516, 3
    %v522 = vperm.slane %v516, 4
    %v523 = vperm.slane %v516, 5
    %v530 = vadd.f32 %v402, %v518
    %v531 = vadd.f32 %v424, %v519
    %v532 = vadd.f32 %v446, %v520
    %v533 = vadd.f32 %v470, %v521
    %v534 = vadd.f32 %v492, %v522
    %v535 = vadd.f32 %v514, %v523
    %v536 = vld [vmem:[#allocation2] sm:$0xff]
    %v537 = vld [vmem:[#allocation2 + $0x8] sm:$0xff]
    %v538 = vld [vmem:[#allocation2 + $0x10] sm:$0xff]
    %v539 = vld [vmem:[#allocation2 + $0x18] sm:$0xff]
    %v540 = vld [vmem:[#allocation2 + $0x20] sm:$0xff]
    %v541 = vld [vmem:[#allocation2 + $0x28] sm:$0xff]
    %v542 = vld [vmem:[#allocation2 + $0x30] sm:$0xff]
    %v543 = vld [vmem:[#allocation2 + $0x38] sm:$0xff]
    %v544 = vld [vmem:[#allocation2 + $0x40] sm:$0xff]
    %v545 = vld [vmem:[#allocation2 + $0x48] sm:$0xff]
    %v546 = vld [vmem:[#allocation2 + $0x50] sm:$0xff]
    %v547 = vld [vmem:[#allocation2 + $0x58] sm:$0xff]
    %v548 = vld [vmem:[#allocation2 + $0x60] sm:$0xff]
    %v549 = vld [vmem:[#allocation2 + $0x68] sm:$0xff]
    %v550 = vld [vmem:[#allocation2 + $0x70] sm:$0xff]
    %v551 = vld [vmem:[#allocation2 + $0x78] sm:$0xff]
    %v552 = vld [vmem:[#allocation2 + $0x80] sm:$0xff]
    %v553 = vld [vmem:[#allocation2 + $0x88] sm:$0xff]
    %v554 = vld [vmem:[#allocation2 + $0x90] sm:$0xff]
    %v555 = vld [vmem:[#allocation2 + $0x98] sm:$0xff]
    %v556 = vld [vmem:[#allocation2 + $0xa0] sm:$0xff]
    %v557 = vld [vmem:[#allocation2 + $0xa8] sm:$0xff]
    %v558 = vld [vmem:[#allocation2 + $0xb0] sm:$0xff]
    %v559 = vld [vmem:[#allocation2 + $0xb8] sm:$0xff]
    %v560 = vld [vmem:[#allocation2 + $0xc0] sm:$0xff]
    %v561 = vld [vmem:[#allocation2 + $0xc8] sm:$0xff]
    %v562 = vld [vmem:[#allocation2 + $0xd0] sm:$0xff]
    %v563 = vld [vmem:[#allocation2 + $0xd8] sm:$0xff]
    %v564 = vld [vmem:[#allocation2 + $0xe0] sm:$0xff]
    %v565 = vld [vmem:[#allocation2 + $0xe8] sm:$0xff]
    %v566 = vld [vmem:[#allocation2 + $0xf0] sm:$0xff]
    %v567 = vld [vmem:[#allocation2 + $0xf8] sm:$0xff]
    %v568 = vld [vmem:[#allocation2 + $0x100] sm:$0xff]
    %v569 = vld [vmem:[#allocation2 + $0x108] sm:$0xff]
    %v570 = vld [vmem:[#allocation2 + $0x110] sm:$0xff]
    %v571 = vld [vmem:[#allocation2 + $0x118] sm:$0xff]
    %v572 = vld [vmem:[#allocation2 + $0x120] sm:$0xff]
    %v573 = vld [vmem:[#allocation2 + $0x128] sm:$0xff]
    %v574 = vld [vmem:[#allocation2 + $0x130] sm:$0xff]
    %v575 = vld [vmem:[#allocation2 + $0x138] sm:$0xff]
    %v576 = vld [vmem:[#allocation2 + $0x140] sm:$0xff]
    %v577 = vld [vmem:[#allocation2 + $0x148] sm:$0xff]
    %v578 = vld [vmem:[#allocation2 + $0x150] sm:$0xff]
    %v579 = vld [vmem:[#allocation2 + $0x158] sm:$0xff]
    %v580 = vld [vmem:[#allocation2 + $0x160] sm:$0xff]
    %v581 = vld [vmem:[#allocation2 + $0x168] sm:$0xff]
    %v582 = vld [vmem:[#allocation2 + $0x170] sm:$0xff]
    %v583 = vld [vmem:[#allocation2 + $0x178] sm:$0xff]
    %v584 = vld [vmem:[%s7] sm:$0x7]
    %v585 = vld [vmem:[#allocation4] sm:$0xff]
    %v586 = vld [vmem:[#allocation4 + $0x8] sm:$0xff]
    %v587 = vld [vmem:[#allocation4 + $0x10] sm:$0xff]
    %v588 = vld [vmem:[#allocation4 + $0x18] sm:$0xff]
    %v589 = vld [vmem:[#allocation4 + $0x20] sm:$0xff]
    %v590 = vld [vmem:[#allocation4 + $0x28] sm:$0xff]
    %v591 = vld [vmem:[#allocation4 + $0x30] sm:$0xff]
    %v592 = vld [vmem:[#allocation4 + $0x38] sm:$0xff]
    %v593 = vld [vmem:[#allocation4 + $0x40] sm:$0xff]
    %v594 = vld [vmem:[#allocation4 + $0x48] sm:$0xff]
    %v595 = vld [vmem:[#allocation4 + $0x50] sm:$0xff]
    %v596 = vld [vmem:[#allocation4 + $0x58] sm:$0xff]
    %v597 = vld [vmem:[#allocation4 + $0x60] sm:$0xff]
    %v598 = vld [vmem:[#allocation4 + $0x68] sm:$0xff]
    %v599 = vld [vmem:[#allocation4 + $0x70] sm:$0xff]
    %v600 = vld [vmem:[#allocation4 + $0x78] sm:$0xff]
    %v601 = vld [vmem:[#allocation4 + $0x80] sm:$0xff]
    %v602 = vld [vmem:[#allocation4 + $0x88] sm:$0xff]
    %v603 = vld [vmem:[#allocation4 + $0x90] sm:$0xff]
    %v604 = vld [vmem:[#allocation4 + $0x98] sm:$0xff]
    %v605 = vld [vmem:[#allocation4 + $0xa0] sm:$0xff]
    %v606 = vld [vmem:[#allocation4 + $0xa8] sm:$0xff]
    %v607 = vld [vmem:[#allocation4 + $0xb0] sm:$0xff]
    %v608 = vld [vmem:[#allocation4 + $0xb8] sm:$0xff]
    %v609 = vld [vmem:[#allocation4 + $0xc0] sm:$0xff]
    %v610 = vld [vmem:[#allocation4 + $0xc8] sm:$0xff]
    %v611 = vld [vmem:[#allocation4 + $0xd0] sm:$0xff]
    %v612 = vld [vmem:[#allocation4 + $0xd8] sm:$0xff]
    %v613 = vld [vmem:[#allocation4 + $0xe0] sm:$0xff]
    %v614 = vld [vmem:[#allocation4 + $0xe8] sm:$0xff]
    %v615 = vld [vmem:[#allocation4 + $0xf0] sm:$0xff]
    %v616 = vld [vmem:[#allocation4 + $0xf8] sm:$0xff]
    %v617 = vld [vmem:[#allocation4 + $0x100] sm:$0xff]
    %v618 = vld [vmem:[#allocation4 + $0x108] sm:$0xff]
    %v619 = vld [vmem:[#allocation4 + $0x110] sm:$0xff]
    %v620 = vld [vmem:[#allocation4 + $0x118] sm:$0xff]
    %v621 = vld [vmem:[#allocation4 + $0x120] sm:$0xff]
    %v622 = vld [vmem:[#allocation4 + $0x128] sm:$0xff]
    %v623 = vld [vmem:[#allocation4 + $0x130] sm:$0xff]
    %v624 = vld [vmem:[#allocation4 + $0x138] sm:$0xff]
    %v625 = vld [vmem:[#allocation4 + $0x140] sm:$0xff]
    %v626 = vld [vmem:[#allocation4 + $0x148] sm:$0xff]
    %v627 = vld [vmem:[#allocation4 + $0x150] sm:$0xff]
    %v628 = vld [vmem:[#allocation4 + $0x158] sm:$0xff]
    %v629 = vld [vmem:[#allocation4 + $0x160] sm:$0xff]
    %v630 = vld [vmem:[#allocation4 + $0x168] sm:$0xff]
    %v631 = vld [vmem:[#allocation4 + $0x170] sm:$0xff]
    %v632 = vld [vmem:[#allocation4 + $0x178] sm:$0xff]
    %v633 = vld [vmem:[%s9] sm:$0x7]
    %v635 = vperm.slane %v584, 0
    %v636 = vperm.slane %v584, 1
    %v637 = vperm.slane %v584, 2
    %641 = vmatpush.msra.mxu0 %v581
    %642 = vmatpush.msra.mxu0 %v578
    %643 = vmatpush.msra.mxu0 %v575
    %644 = vmatpush.msra.mxu0 %v572
    %645 = vmatpush.msra.mxu0 %v569
    %646 = vmatpush.msra.mxu0 %v566
    %647 = vmatpush.msra.mxu0 %v563
    %648 = vmatpush.msra.mxu0 %v560
    %649 = vmatpush.msra.mxu0 %v557
    %650 = vmatpush.msra.mxu0 %v554
    %651 = vmatpush.msra.mxu0 %v551
    %652 = vmatpush.msra.mxu0 %v548
    %653 = vmatpush.msra.mxu0 %v545
    %654 = vmatpush.msra.mxu0 %v542
    %655 = vmatpush.msra.mxu0 %v539
    %656 = vmatpush.msra.mxu0 %v536
    %657 = vmatmul.f32.gmra.mxu0 0.0
    %v658 = vpop.f32.mrf.mxu0
    %v659 = vadd.f32 %v635, %v658
    %660 = vdwg.mxu0
    %661 = vmatpush.msra.mxu0 %v582
    %662 = vmatpush.msra.mxu0 %v579
    %663 = vmatpush.msra.mxu0 %v576
    %664 = vmatpush.msra.mxu0 %v573
    %665 = vmatpush.msra.mxu0 %v570
    %666 = vmatpush.msra.mxu0 %v567
    %667 = vmatpush.msra.mxu0 %v564
    %668 = vmatpush.msra.mxu0 %v561
    %669 = vmatpush.msra.mxu0 %v558
    %670 = vmatpush.msra.mxu0 %v555
    %671 = vmatpush.msra.mxu0 %v552
    %672 = vmatpush.msra.mxu0 %v549
    %673 = vmatpush.msra.mxu0 %v546
    %674 = vmatpush.msra.mxu0 %v543
    %675 = vmatpush.msra.mxu0 %v540
    %676 = vmatpush.msra.mxu0 %v537
    %677 = vmatmul.f32.gmra.mxu0 0.0
    %v678 = vpop.f32.mrf.mxu0
    %v679 = vadd.f32 %v636, %v678
    %680 = vdwg.mxu0
    %681 = vmatpush.msra.mxu0 %v583
    %682 = vmatpush.msra.mxu0 %v580
    %683 = vmatpush.msra.mxu0 %v577
    %684 = vmatpush.msra.mxu0 %v574
    %685 = vmatpush.msra.mxu0 %v571
    %686 = vmatpush.msra.mxu0 %v568
    %687 = vmatpush.msra.mxu0 %v565
    %688 = vmatpush.msra.mxu0 %v562
    %689 = vmatpush.msra.mxu0 %v559
    %690 = vmatpush.msra.mxu0 %v556
    %691 = vmatpush.msra.mxu0 %v553
    %692 = vmatpush.msra.mxu0 %v550
    %693 = vmatpush.msra.mxu0 %v547
    %694 = vmatpush.msra.mxu0 %v544
    %695 = vmatpush.msra.mxu0 %v541
    %696 = vmatpush.msra.mxu0 %v538
    %697 = vmatmul.f32.gmra.mxu0 0.0
    %v698 = vpop.f32.mrf.mxu0
    %v699 = vadd.f32 %v637, %v698
    %700 = vdwg.mxu0
    %v701 = vadd.f32 %v530, %v659
    %v702 = vxor.u32 %v701, 2147483648
    %v703 = vmul.f32 %v702, 1.442695
    %v704 = vpow.pop %v703
    %v705 = vadd.f32 %v704, 1.0
    %v706 = vrcp.pop %v705
    %v707 = vmul.f32 %v705, %v706
    %v708 = vsub.f32 1.0, %v707
    %v709 = vmul.f32 %v706, %v708
    %v710 = vadd.f32 %v706, %v709
    %vm711 = vweird.f32 %v705
    %vm712 = vweird.f32 %v706
    %vm713 = vmor %vm711, %vm712
    %v714 = vsel %vm713, %v706, %v710
    %v715 = vand.u32 2147483647, %v705
    %vm716 = vcmp.eq.f32.partialorder %v715, 8.507059e+37
    %v717 = vand.u32 %v705, 2147483648
    %v718 = vor.u32 1.1754944e-38, %v717
    %v719 = vsel %vm716, %v718, %v714
    %v720 = vmul.f32 1.0, %v719
    %v721 = vadd.f32 %v531, %v679
    %v722 = vxor.u32 %v721, 2147483648
    %v723 = vmul.f32 %v722, 1.442695
    %v724 = vpow.pop %v723
    %v725 = vadd.f32 %v724, 1.0
    %v726 = vrcp.pop %v725
    %v727 = vmul.f32 %v725, %v726
    %v728 = vsub.f32 1.0, %v727
    %v729 = vmul.f32 %v726, %v728
    %v730 = vadd.f32 %v726, %v729
    %vm731 = vweird.f32 %v725
    %vm732 = vweird.f32 %v726
    %vm733 = vmor %vm731, %vm732
    %v734 = vsel %vm733, %v726, %v730
    %v735 = vand.u32 2147483647, %v725
    %vm736 = vcmp.eq.f32.partialorder %v735, 8.507059e+37
    %v737 = vand.u32 %v725, 2147483648
    %v738 = vor.u32 1.1754944e-38, %v737
    %v739 = vsel %vm736, %v738, %v734
    %v740 = vmul.f32 1.0, %v739
    %v741 = vmul.f32 %v720, %v699
    %v742 = vadd.f32 %v532, %v741
    %v743 = vtanh.pop %v742
    %v744 = vsub.f32 1.0, %v740
    %v745 = vmul.f32 %v744, %v743
    %v746 = vmul.f32 %v740, 0.0
    %v747 = vadd.f32 %v745, %v746
    %v749 = vperm.slane %v633, 0
    %v750 = vperm.slane %v633, 1
    %v751 = vperm.slane %v633, 2
    %755 = vmatpush.msra.mxu0 %v630
    %756 = vmatpush.msra.mxu0 %v627
    %757 = vmatpush.msra.mxu0 %v624
    %758 = vmatpush.msra.mxu0 %v621
    %759 = vmatpush.msra.mxu0 %v618
    %760 = vmatpush.msra.mxu0 %v615
    %761 = vmatpush.msra.mxu0 %v612
    %762 = vmatpush.msra.mxu0 %v609
    %763 = vmatpush.msra.mxu0 %v606
    %764 = vmatpush.msra.mxu0 %v603
    %765 = vmatpush.msra.mxu0 %v600
    %766 = vmatpush.msra.mxu0 %v597
    %767 = vmatpush.msra.mxu0 %v594
    %768 = vmatpush.msra.mxu0 %v591
    %769 = vmatpush.msra.mxu0 %v588
    %770 = vmatpush.msra.mxu0 %v585
    %771 = vmatmul.f32.gmra.mxu0 0.0
    %v772 = vpop.f32.mrf.mxu0
    %v773 = vadd.f32 %v749, %v772
    %774 = vdwg.mxu0
    %775 = vmatpush.msra.mxu0 %v631
    %776 = vmatpush.msra.mxu0 %v628
    %777 = vmatpush.msra.mxu0 %v625
    %778 = vmatpush.msra.mxu0 %v622
    %779 = vmatpush.msra.mxu0 %v619
    %780 = vmatpush.msra.mxu0 %v616
    %781 = vmatpush.msra.mxu0 %v613
    %782 = vmatpush.msra.mxu0 %v610
    %783 = vmatpush.msra.mxu0 %v607
    %784 = vmatpush.msra.mxu0 %v604
    %785 = vmatpush.msra.mxu0 %v601
    %786 = vmatpush.msra.mxu0 %v598
    %787 = vmatpush.msra.mxu0 %v595
    %788 = vmatpush.msra.mxu0 %v592
    %789 = vmatpush.msra.mxu0 %v589
    %790 = vmatpush.msra.mxu0 %v586
    %791 = vmatmul.f32.gmra.mxu0 0.0
    %v792 = vpop.f32.mrf.mxu0
    %v793 = vadd.f32 %v750, %v792
    %794 = vdwg.mxu0
    %795 = vmatpush.msra.mxu0 %v632
    %796 = vmatpush.msra.mxu0 %v629
    %797 = vmatpush.msra.mxu0 %v626
    %798 = vmatpush.msra.mxu0 %v623
    %799 = vmatpush.msra.mxu0 %v620
    %800 = vmatpush.msra.mxu0 %v617
    %801 = vmatpush.msra.mxu0 %v614
    %802 = vmatpush.msra.mxu0 %v611
    %803 = vmatpush.msra.mxu0 %v608
    %804 = vmatpush.msra.mxu0 %v605
    %805 = vmatpush.msra.mxu0 %v602
    %806 = vmatpush.msra.mxu0 %v599
    %807 = vmatpush.msra.mxu0 %v596
    %808 = vmatpush.msra.mxu0 %v593
    %809 = vmatpush.msra.mxu0 %v590
    %810 = vmatpush.msra.mxu0 %v587
    %811 = vmatmul.f32.gmra.mxu0 0.0
    %v812 = vpop.f32.mrf.mxu0
    %v813 = vadd.f32 %v751, %v812
    %814 = vdwg.mxu0
    %v815 = vadd.f32 %v533, %v773
    %v816 = vxor.u32 %v815, 2147483648
    %v817 = vmul.f32 %v816, 1.442695
    %v818 = vpow.pop %v817
    %v819 = vadd.f32 %v818, 1.0
    %v820 = vrcp.pop %v819
    %v821 = vmul.f32 %v819, %v820
    %v822 = vsub.f32 1.0, %v821
    %v823 = vmul.f32 %v820, %v822
    %v824 = vadd.f32 %v820, %v823
    %vm825 = vweird.f32 %v819
    %vm826 = vweird.f32 %v820
    %vm827 = vmor %vm825, %vm826
    %v828 = vsel %vm827, %v820, %v824
    %v829 = vand.u32 2147483647, %v819
    %vm830 = vcmp.eq.f32.partialorder %v829, 8.507059e+37
    %v831 = vand.u32 %v819, 2147483648
    %v832 = vor.u32 1.1754944e-38, %v831
    %v833 = vsel %vm830, %v832, %v828
    %v834 = vmul.f32 1.0, %v833
    %v835 = vadd.f32 %v534, %v793
    %v836 = vxor.u32 %v835, 2147483648
    %v837 = vmul.f32 %v836, 1.442695
    %v838 = vpow.pop %v837
    %v839 = vadd.f32 %v838, 1.0
    %v840 = vrcp.pop %v839
    %v841 = vmul.f32 %v839, %v840
    %v842 = vsub.f32 1.0, %v841
    %v843 = vmul.f32 %v840, %v842
    %v844 = vadd.f32 %v840, %v843
    %vm845 = vweird.f32 %v839
    %vm846 = vweird.f32 %v840
    %vm847 = vmor %vm845, %vm846
    %v848 = vsel %vm847, %v840, %v844
    %v849 = vand.u32 2147483647, %v839
    %vm850 = vcmp.eq.f32.partialorder %v849, 8.507059e+37
    %v851 = vand.u32 %v839, 2147483648
    %v852 = vor.u32 1.1754944e-38, %v851
    %v853 = vsel %vm850, %v852, %v848
    %v854 = vmul.f32 1.0, %v853
    %v855 = vmul.f32 %v834, %v813
    %v856 = vadd.f32 %v535, %v855
    %v857 = vtanh.pop %v856
    %v858 = vsub.f32 1.0, %v854
    %v859 = vmul.f32 %v858, %v857
    %v860 = vmul.f32 %v854, 0.0
    %v861 = vadd.f32 %v859, %v860
    %862 = vmatpush.msra.mxu0 %v581
    %863 = vmatpush.msra.mxu0 %v578
    %864 = vmatpush.msra.mxu0 %v575
    %865 = vmatpush.msra.mxu0 %v572
    %866 = vmatpush.msra.mxu0 %v569
    %867 = vmatpush.msra.mxu0 %v566
    %868 = vmatpush.msra.mxu0 %v563
    %869 = vmatpush.msra.mxu0 %v560
    %870 = vmatpush.msra.mxu0 %v557
    %871 = vmatpush.msra.mxu0 %v554
    %872 = vmatpush.msra.mxu0 %v551
    %873 = vmatpush.msra.mxu0 %v548
    %874 = vmatpush.msra.mxu0 %v545
    %875 = vmatpush.msra.mxu0 %v542
    %876 = vmatpush.msra.mxu0 %v539
    %877 = vmatpush.msra.mxu0 %v536
    %878 = vmatmul.f32.gmra.mxu0 %v747
    %v879 = vpop.f32.mrf.mxu0
    %v880 = vadd.f32 %v635, %v879
    %881 = vdwg.mxu0
    %882 = vmatpush.msra.mxu0 %v582
    %883 = vmatpush.msra.mxu0 %v579
    %884 = vmatpush.msra.mxu0 %v576
    %885 = vmatpush.msra.mxu0 %v573
    %886 = vmatpush.msra.mxu0 %v570
    %887 = vmatpush.msra.mxu0 %v567
    %888 = vmatpush.msra.mxu0 %v564
    %889 = vmatpush.msra.mxu0 %v561
    %890 = vmatpush.msra.mxu0 %v558
    %891 = vmatpush.msra.mxu0 %v555
    %892 = vmatpush.msra.mxu0 %v552
    %893 = vmatpush.msra.mxu0 %v549
    %894 = vmatpush.msra.mxu0 %v546
    %895 = vmatpush.msra.mxu0 %v543
    %896 = vmatpush.msra.mxu0 %v540
    %897 = vmatpush.msra.mxu0 %v537
    %898 = vmatmul.f32.gmra.mxu0 %v747
    %v899 = vpop.f32.mrf.mxu0
    %v900 = vadd.f32 %v636, %v899
    %901 = vdwg.mxu0
    %902 = vmatpush.msra.mxu0 %v583
    %903 = vmatpush.msra.mxu0 %v580
    %904 = vmatpush.msra.mxu0 %v577
    %905 = vmatpush.msra.mxu0 %v574
    %906 = vmatpush.msra.mxu0 %v571
    %907 = vmatpush.msra.mxu0 %v568
    %908 = vmatpush.msra.mxu0 %v565
    %909 = vmatpush.msra.mxu0 %v562
    %910 = vmatpush.msra.mxu0 %v559
    %911 = vmatpush.msra.mxu0 %v556
    %912 = vmatpush.msra.mxu0 %v553
    %913 = vmatpush.msra.mxu0 %v550
    %914 = vmatpush.msra.mxu0 %v547
    %915 = vmatpush.msra.mxu0 %v544
    %916 = vmatpush.msra.mxu0 %v541
    %917 = vmatpush.msra.mxu0 %v538
    %918 = vmatmul.f32.gmra.mxu0 %v747
    %v919 = vpop.f32.mrf.mxu0
    %v920 = vadd.f32 %v637, %v919
    %921 = vdwg.mxu0
    %v923 = vrot.slane %v880, 7
    %v925 = vadd.f32 %v530, %v923
    %v926 = vxor.u32 %v925, 2147483648
    %v927 = vmul.f32 %v926, 1.442695
    %v928 = vpow.pop %v927
    %v929 = vadd.f32 %v928, 1.0
    %v930 = vrcp.pop %v929
    %v931 = vmul.f32 %v929, %v930
    %v932 = vsub.f32 1.0, %v931
    %v933 = vmul.f32 %v930, %v932
    %v934 = vadd.f32 %v930, %v933
    %vm935 = vweird.f32 %v929
    %vm936 = vweird.f32 %v930
    %vm937 = vmor %vm935, %vm936
    %v938 = vsel %vm937, %v930, %v934
    %v939 = vand.u32 2147483647, %v929
    %vm940 = vcmp.eq.f32.partialorder %v939, 8.507059e+37
    %v941 = vand.u32 %v929, 2147483648
    %v942 = vor.u32 1.1754944e-38, %v941
    %v943 = vsel %vm940, %v942, %v938
    %v944 = vmul.f32 1.0, %v943
    %v946 = vrot.slane %v900, 7
    %v948 = vadd.f32 %v531, %v946
    %v949 = vxor.u32 %v948, 2147483648
    %v950 = vmul.f32 %v949, 1.442695
    %v951 = vpow.pop %v950
    %v952 = vadd.f32 %v951, 1.0
    %v953 = vrcp.pop %v952
    %v954 = vmul.f32 %v952, %v953
    %v955 = vsub.f32 1.0, %v954
    %v956 = vmul.f32 %v953, %v955
    %v957 = vadd.f32 %v953, %v956
    %vm958 = vweird.f32 %v952
    %vm959 = vweird.f32 %v953
    %vm960 = vmor %vm958, %vm959
    %v961 = vsel %vm960, %v953, %v957
    %v962 = vand.u32 2147483647, %v952
    %vm963 = vcmp.eq.f32.partialorder %v962, 8.507059e+37
    %v964 = vand.u32 %v952, 2147483648
    %v965 = vor.u32 1.1754944e-38, %v964
    %v966 = vsel %vm963, %v965, %v961
    %v967 = vmul.f32 1.0, %v966
    %v969 = vrot.slane %v920, 7
    %v971 = vmul.f32 %v944, %v969
    %v972 = vadd.f32 %v532, %v971
    %v973 = vtanh.pop %v972
    %v974 = vsub.f32 1.0, %v967
    %v975 = vmul.f32 %v974, %v973
    %v977 = vrot.slane %v747, 7
    %v979 = vmul.f32 %v967, %v977
    %v980 = vadd.f32 %v975, %v979
    %981 = vmatpush.msra.mxu0 %v630
    %982 = vmatpush.msra.mxu0 %v627
    %983 = vmatpush.msra.mxu0 %v624
    %984 = vmatpush.msra.mxu0 %v621
    %985 = vmatpush.msra.mxu0 %v618
    %986 = vmatpush.msra.mxu0 %v615
    %987 = vmatpush.msra.mxu0 %v612
    %988 = vmatpush.msra.mxu0 %v609
    %989 = vmatpush.msra.mxu0 %v606
    %990 = vmatpush.msra.mxu0 %v603
    %991 = vmatpush.msra.mxu0 %v600
    %992 = vmatpush.msra.mxu0 %v597
    %993 = vmatpush.msra.mxu0 %v594
    %994 = vmatpush.msra.mxu0 %v591
    %995 = vmatpush.msra.mxu0 %v588
    %996 = vmatpush.msra.mxu0 %v585
    %997 = vmatmul.f32.gmra.mxu0 %v861
    %v998 = vpop.f32.mrf.mxu0
    %v999 = vadd.f32 %v749, %v998
    %1000 = vdwg.mxu0
    %1001 = vmatpush.msra.mxu0 %v631
    %1002 = vmatpush.msra.mxu0 %v628
    %1003 = vmatpush.msra.mxu0 %v625
    %1004 = vmatpush.msra.mxu0 %v622
    %1005 = vmatpush.msra.mxu0 %v619
    %1006 = vmatpush.msra.mxu0 %v616
    %1007 = vmatpush.msra.mxu0 %v613
    %1008 = vmatpush.msra.mxu0 %v610
    %1009 = vmatpush.msra.mxu0 %v607
    %1010 = vmatpush.msra.mxu0 %v604
    %1011 = vmatpush.msra.mxu0 %v601
    %1012 = vmatpush.msra.mxu0 %v598
    %1013 = vmatpush.msra.mxu0 %v595
    %1014 = vmatpush.msra.mxu0 %v592
    %1015 = vmatpush.msra.mxu0 %v589
    %1016 = vmatpush.msra.mxu0 %v586
    %1017 = vmatmul.f32.gmra.mxu0 %v861
    %v1018 = vpop.f32.mrf.mxu0
    %v1019 = vadd.f32 %v750, %v1018
    %1020 = vdwg.mxu0
    %1021 = vmatpush.msra.mxu0 %v632
    %1022 = vmatpush.msra.mxu0 %v629
    %1023 = vmatpush.msra.mxu0 %v626
    %1024 = vmatpush.msra.mxu0 %v623
    %1025 = vmatpush.msra.mxu0 %v620
    %1026 = vmatpush.msra.mxu0 %v617
    %1027 = vmatpush.msra.mxu0 %v614
    %1028 = vmatpush.msra.mxu0 %v611
    %1029 = vmatpush.msra.mxu0 %v608
    %1030 = vmatpush.msra.mxu0 %v605
    %1031 = vmatpush.msra.mxu0 %v602
    %1032 = vmatpush.msra.mxu0 %v599
    %1033 = vmatpush.msra.mxu0 %v596
    %1034 = vmatpush.msra.mxu0 %v593
    %1035 = vmatpush.msra.mxu0 %v590
    %1036 = vmatpush.msra.mxu0 %v587
    %1037 = vmatmul.f32.gmra.mxu0 %v861
    %v1038 = vpop.f32.mrf.mxu0
    %v1039 = vadd.f32 %v751, %v1038
    %1040 = vdwg.mxu0
    %v1042 = vrot.slane %v999, 7
    %v1044 = vadd.f32 %v533, %v1042
    %v1045 = vxor.u32 %v1044, 2147483648
    %v1046 = vmul.f32 %v1045, 1.442695
    %v1047 = vpow.pop %v1046
    %v1048 = vadd.f32 %v1047, 1.0
    %v1049 = vrcp.pop %v1048
    %v1050 = vmul.f32 %v1048, %v1049
    %v1051 = vsub.f32 1.0, %v1050
    %v1052 = vmul.f32 %v1049, %v1051
    %v1053 = vadd.f32 %v1049, %v1052
    %vm1054 = vweird.f32 %v1048
    %vm1055 = vweird.f32 %v1049
    %vm1056 = vmor %vm1054, %vm1055
    %v1057 = vsel %vm1056, %v1049, %v1053
    %v1058 = vand.u32 2147483647, %v1048
    %vm1059 = vcmp.eq.f32.partialorder %v1058, 8.507059e+37
    %v1060 = vand.u32 %v1048, 2147483648
    %v1061 = vor.u32 1.1754944e-38, %v1060
    %v1062 = vsel %vm1059, %v1061, %v1057
    %v1063 = vmul.f32 1.0, %v1062
    %v1065 = vrot.slane %v1019, 7
    %v1067 = vadd.f32 %v534, %v1065
    %v1068 = vxor.u32 %v1067, 2147483648
    %v1069 = vmul.f32 %v1068, 1.442695
    %v1070 = vpow.pop %v1069
    %v1071 = vadd.f32 %v1070, 1.0
    %v1072 = vrcp.pop %v1071
    %v1073 = vmul.f32 %v1071, %v1072
    %v1074 = vsub.f32 1.0, %v1073
    %v1075 = vmul.f32 %v1072, %v1074
    %v1076 = vadd.f32 %v1072, %v1075
    %vm1077 = vweird.f32 %v1071
    %vm1078 = vweird.f32 %v1072
    %vm1079 = vmor %vm1077, %vm1078
    %v1080 = vsel %vm1079, %v1072, %v1076
    %v1081 = vand.u32 2147483647, %v1071
    %vm1082 = vcmp.eq.f32.partialorder %v1081, 8.507059e+37
    %v1083 = vand.u32 %v1071, 2147483648
    %v1084 = vor.u32 1.1754944e-38, %v1083
    %v1085 = vsel %vm1082, %v1084, %v1080
    %v1086 = vmul.f32 1.0, %v1085
    %v1088 = vrot.slane %v1039, 7
    %v1090 = vmul.f32 %v1063, %v1088
    %v1091 = vadd.f32 %v535, %v1090
    %v1092 = vtanh.pop %v1091
    %v1093 = vsub.f32 1.0, %v1086
    %v1094 = vmul.f32 %v1093, %v1092
    %v1096 = vrot.slane %v861, 7
    %v1098 = vmul.f32 %v1086, %v1096
    %v1099 = vadd.f32 %v1094, %v1098
    %v1101 = vrot.slane %v980, 1
    %1103 = vmatpush.msra.mxu0 %v581
    %1104 = vmatpush.msra.mxu0 %v578
    %1105 = vmatpush.msra.mxu0 %v575
    %1106 = vmatpush.msra.mxu0 %v572
    %1107 = vmatpush.msra.mxu0 %v569
    %1108 = vmatpush.msra.mxu0 %v566
    %1109 = vmatpush.msra.mxu0 %v563
    %1110 = vmatpush.msra.mxu0 %v560
    %1111 = vmatpush.msra.mxu0 %v557
    %1112 = vmatpush.msra.mxu0 %v554
    %1113 = vmatpush.msra.mxu0 %v551
    %1114 = vmatpush.msra.mxu0 %v548
    %1115 = vmatpush.msra.mxu0 %v545
    %1116 = vmatpush.msra.mxu0 %v542
    %1117 = vmatpush.msra.mxu0 %v539
    %1118 = vmatpush.msra.mxu0 %v536
    %1119 = vmatmul.f32.gmra.mxu0 %v1101
    %v1120 = vpop.f32.mrf.mxu0
    %v1121 = vadd.f32 %v635, %v1120
    %1122 = vdwg.mxu0
    %1123 = vmatpush.msra.mxu0 %v582
    %1124 = vmatpush.msra.mxu0 %v579
    %1125 = vmatpush.msra.mxu0 %v576
    %1126 = vmatpush.msra.mxu0 %v573
    %1127 = vmatpush.msra.mxu0 %v570
    %1128 = vmatpush.msra.mxu0 %v567
    %1129 = vmatpush.msra.mxu0 %v564
    %1130 = vmatpush.msra.mxu0 %v561
    %1131 = vmatpush.msra.mxu0 %v558
    %1132 = vmatpush.msra.mxu0 %v555
    %1133 = vmatpush.msra.mxu0 %v552
    %1134 = vmatpush.msra.mxu0 %v549
    %1135 = vmatpush.msra.mxu0 %v546
    %1136 = vmatpush.msra.mxu0 %v543
    %1137 = vmatpush.msra.mxu0 %v540
    %1138 = vmatpush.msra.mxu0 %v537
    %1139 = vmatmul.f32.gmra.mxu0 %v1101
    %v1140 = vpop.f32.mrf.mxu0
    %v1141 = vadd.f32 %v636, %v1140
    %1142 = vdwg.mxu0
    %1143 = vmatpush.msra.mxu0 %v583
    %1144 = vmatpush.msra.mxu0 %v580
    %1145 = vmatpush.msra.mxu0 %v577
    %1146 = vmatpush.msra.mxu0 %v574
    %1147 = vmatpush.msra.mxu0 %v571
    %1148 = vmatpush.msra.mxu0 %v568
    %1149 = vmatpush.msra.mxu0 %v565
    %1150 = vmatpush.msra.mxu0 %v562
    %1151 = vmatpush.msra.mxu0 %v559
    %1152 = vmatpush.msra.mxu0 %v556
    %1153 = vmatpush.msra.mxu0 %v553
    %1154 = vmatpush.msra.mxu0 %v550
    %1155 = vmatpush.msra.mxu0 %v547
    %1156 = vmatpush.msra.mxu0 %v544
    %1157 = vmatpush.msra.mxu0 %v541
    %1158 = vmatpush.msra.mxu0 %v538
    %1159 = vmatmul.f32.gmra.mxu0 %v1101
    %v1160 = vpop.f32.mrf.mxu0
    %v1161 = vadd.f32 %v637, %v1160
    %1162 = vdwg.mxu0
    %v1164 = vrot.slane %v1121, 6
    %v1166 = vadd.f32 %v530, %v1164
    %v1167 = vxor.u32 %v1166, 2147483648
    %v1168 = vmul.f32 %v1167, 1.442695
    %v1169 = vpow.pop %v1168
    %v1170 = vadd.f32 %v1169, 1.0
    %v1171 = vrcp.pop %v1170
    %v1172 = vmul.f32 %v1170, %v1171
    %v1173 = vsub.f32 1.0, %v1172
    %v1174 = vmul.f32 %v1171, %v1173
    %v1175 = vadd.f32 %v1171, %v1174
    %vm1176 = vweird.f32 %v1170
    %vm1177 = vweird.f32 %v1171
    %vm1178 = vmor %vm1176, %vm1177
    %v1179 = vsel %vm1178, %v1171, %v1175
    %v1180 = vand.u32 2147483647, %v1170
    %vm1181 = vcmp.eq.f32.partialorder %v1180, 8.507059e+37
    %v1182 = vand.u32 %v1170, 2147483648
    %v1183 = vor.u32 1.1754944e-38, %v1182
    %v1184 = vsel %vm1181, %v1183, %v1179
    %v1185 = vmul.f32 1.0, %v1184
    %v1187 = vrot.slane %v1141, 6
    %v1189 = vadd.f32 %v531, %v1187
    %v1190 = vxor.u32 %v1189, 2147483648
    %v1191 = vmul.f32 %v1190, 1.442695
    %v1192 = vpow.pop %v1191
    %v1193 = vadd.f32 %v1192, 1.0
    %v1194 = vrcp.pop %v1193
    %v1195 = vmul.f32 %v1193, %v1194
    %v1196 = vsub.f32 1.0, %v1195
    %v1197 = vmul.f32 %v1194, %v1196
    %v1198 = vadd.f32 %v1194, %v1197
    %vm1199 = vweird.f32 %v1193
    %vm1200 = vweird.f32 %v1194
    %vm1201 = vmor %vm1199, %vm1200
    %v1202 = vsel %vm1201, %v1194, %v1198
    %v1203 = vand.u32 2147483647, %v1193
    %vm1204 = vcmp.eq.f32.partialorder %v1203, 8.507059e+37
    %v1205 = vand.u32 %v1193, 2147483648
    %v1206 = vor.u32 1.1754944e-38, %v1205
    %v1207 = vsel %vm1204, %v1206, %v1202
    %v1208 = vmul.f32 1.0, %v1207
    %v1210 = vrot.slane %v1161, 6
    %v1212 = vmul.f32 %v1185, %v1210
    %v1213 = vadd.f32 %v532, %v1212
    %v1214 = vtanh.pop %v1213
    %v1215 = vsub.f32 1.0, %v1208
    %v1216 = vmul.f32 %v1215, %v1214
    %v1217 = vrot.slane %v980, 7
    %v1219 = vmul.f32 %v1208, %v1217
    %v1220 = vadd.f32 %v1216, %v1219
    %v1222 = vrot.slane %v1099, 1
    %1224 = vmatpush.msra.mxu0 %v630
    %1225 = vmatpush.msra.mxu0 %v627
    %1226 = vmatpush.msra.mxu0 %v624
    %1227 = vmatpush.msra.mxu0 %v621
    %1228 = vmatpush.msra.mxu0 %v618
    %1229 = vmatpush.msra.mxu0 %v615
    %1230 = vmatpush.msra.mxu0 %v612
    %1231 = vmatpush.msra.mxu0 %v609
    %1232 = vmatpush.msra.mxu0 %v606
    %1233 = vmatpush.msra.mxu0 %v603
    %1234 = vmatpush.msra.mxu0 %v600
    %1235 = vmatpush.msra.mxu0 %v597
    %1236 = vmatpush.msra.mxu0 %v594
    %1237 = vmatpush.msra.mxu0 %v591
    %1238 = vmatpush.msra.mxu0 %v588
    %1239 = vmatpush.msra.mxu0 %v585
    %1240 = vmatmul.f32.gmra.mxu0 %v1222
    %v1241 = vpop.f32.mrf.mxu0
    %v1242 = vadd.f32 %v749, %v1241
    %1243 = vdwg.mxu0
    %1244 = vmatpush.msra.mxu0 %v631
    %1245 = vmatpush.msra.mxu0 %v628
    %1246 = vmatpush.msra.mxu0 %v625
    %1247 = vmatpush.msra.mxu0 %v622
    %1248 = vmatpush.msra.mxu0 %v619
    %1249 = vmatpush.msra.mxu0 %v616
    %1250 = vmatpush.msra.mxu0 %v613
    %1251 = vmatpush.msra.mxu0 %v610
    %1252 = vmatpush.msra.mxu0 %v607
    %1253 = vmatpush.msra.mxu0 %v604
    %1254 = vmatpush.msra.mxu0 %v601
    %1255 = vmatpush.msra.mxu0 %v598
    %1256 = vmatpush.msra.mxu0 %v595
    %1257 = vmatpush.msra.mxu0 %v592
    %1258 = vmatpush.msra.mxu0 %v589
    %1259 = vmatpush.msra.mxu0 %v586
    %1260 = vmatmul.f32.gmra.mxu0 %v1222
    %v1261 = vpop.f32.mrf.mxu0
    %v1262 = vadd.f32 %v750, %v1261
    %1263 = vdwg.mxu0
    %1264 = vmatpush.msra.mxu0 %v632
    %1265 = vmatpush.msra.mxu0 %v629
    %1266 = vmatpush.msra.mxu0 %v626
    %1267 = vmatpush.msra.mxu0 %v623
    %1268 = vmatpush.msra.mxu0 %v620
    %1269 = vmatpush.msra.mxu0 %v617
    %1270 = vmatpush.msra.mxu0 %v614
    %1271 = vmatpush.msra.mxu0 %v611
    %1272 = vmatpush.msra.mxu0 %v608
    %1273 = vmatpush.msra.mxu0 %v605
    %1274 = vmatpush.msra.mxu0 %v602
    %1275 = vmatpush.msra.mxu0 %v599
    %1276 = vmatpush.msra.mxu0 %v596
    %1277 = vmatpush.msra.mxu0 %v593
    %1278 = vmatpush.msra.mxu0 %v590
    %1279 = vmatpush.msra.mxu0 %v587
    %1280 = vmatmul.f32.gmra.mxu0 %v1222
    %v1281 = vpop.f32.mrf.mxu0
    %v1282 = vadd.f32 %v751, %v1281
    %1283 = vdwg.mxu0
    %v1285 = vrot.slane %v1242, 6
    %v1287 = vadd.f32 %v533, %v1285
    %v1288 = vxor.u32 %v1287, 2147483648
    %v1289 = vmul.f32 %v1288, 1.442695
    %v1290 = vpow.pop %v1289
    %v1291 = vadd.f32 %v1290, 1.0
    %v1292 = vrcp.pop %v1291
    %v1293 = vmul.f32 %v1291, %v1292
    %v1294 = vsub.f32 1.0, %v1293
    %v1295 = vmul.f32 %v1292, %v1294
    %v1296 = vadd.f32 %v1292, %v1295
    %vm1297 = vweird.f32 %v1291
    %vm1298 = vweird.f32 %v1292
    %vm1299 = vmor %vm1297, %vm1298
    %v1300 = vsel %vm1299, %v1292, %v1296
    %v1301 = vand.u32 2147483647, %v1291
    %vm1302 = vcmp.eq.f32.partialorder %v1301, 8.507059e+37
    %v1303 = vand.u32 %v1291, 2147483648
    %v1304 = vor.u32 1.1754944e-38, %v1303
    %v1305 = vsel %vm1302, %v1304, %v1300
    %v1306 = vmul.f32 1.0, %v1305
    %v1308 = vrot.slane %v1262, 6
    %v1310 = vadd.f32 %v534, %v1308
    %v1311 = vxor.u32 %v1310, 2147483648
    %v1312 = vmul.f32 %v1311, 1.442695
    %v1313 = vpow.pop %v1312
    %v1314 = vadd.f32 %v1313, 1.0
    %v1315 = vrcp.pop %v1314
    %v1316 = vmul.f32 %v1314, %v1315
    %v1317 = vsub.f32 1.0, %v1316
    %v1318 = vmul.f32 %v1315, %v1317
    %v1319 = vadd.f32 %v1315, %v1318
    %vm1320 = vweird.f32 %v1314
    %vm1321 = vweird.f32 %v1315
    %vm1322 = vmor %vm1320, %vm1321
    %v1323 = vsel %vm1322, %v1315, %v1319
    %v1324 = vand.u32 2147483647, %v1314
    %vm1325 = vcmp.eq.f32.partialorder %v1324, 8.507059e+37
    %v1326 = vand.u32 %v1314, 2147483648
    %v1327 = vor.u32 1.1754944e-38, %v1326
    %v1328 = vsel %vm1325, %v1327, %v1323
    %v1329 = vmul.f32 1.0, %v1328
    %v1331 = vrot.slane %v1282, 6
    %v1333 = vmul.f32 %v1306, %v1331
    %v1334 = vadd.f32 %v535, %v1333
    %v1335 = vtanh.pop %v1334
    %v1336 = vsub.f32 1.0, %v1329
    %v1337 = vmul.f32 %v1336, %v1335
    %v1338 = vrot.slane %v1099, 7
    %v1340 = vmul.f32 %v1329, %v1338
    %v1341 = vadd.f32 %v1337, %v1340
    %v1343 = vrot.slane %v1220, 2
    %1345 = vmatpush.msra.mxu0 %v581
    %1346 = vmatpush.msra.mxu0 %v578
    %1347 = vmatpush.msra.mxu0 %v575
    %1348 = vmatpush.msra.mxu0 %v572
    %1349 = vmatpush.msra.mxu0 %v569
    %1350 = vmatpush.msra.mxu0 %v566
    %1351 = vmatpush.msra.mxu0 %v563
    %1352 = vmatpush.msra.mxu0 %v560
    %1353 = vmatpush.msra.mxu0 %v557
    %1354 = vmatpush.msra.mxu0 %v554
    %1355 = vmatpush.msra.mxu0 %v551
    %1356 = vmatpush.msra.mxu0 %v548
    %1357 = vmatpush.msra.mxu0 %v545
    %1358 = vmatpush.msra.mxu0 %v542
    %1359 = vmatpush.msra.mxu0 %v539
    %1360 = vmatpush.msra.mxu0 %v536
    %1361 = vmatmul.f32.gmra.mxu0 %v1343
    %v1362 = vpop.f32.mrf.mxu0
    %v1363 = vadd.f32 %v635, %v1362
    %1364 = vdwg.mxu0
    %1365 = vmatpush.msra.mxu0 %v582
    %1366 = vmatpush.msra.mxu0 %v579
    %1367 = vmatpush.msra.mxu0 %v576
    %1368 = vmatpush.msra.mxu0 %v573
    %1369 = vmatpush.msra.mxu0 %v570
    %1370 = vmatpush.msra.mxu0 %v567
    %1371 = vmatpush.msra.mxu0 %v564
    %1372 = vmatpush.msra.mxu0 %v561
    %1373 = vmatpush.msra.mxu0 %v558
    %1374 = vmatpush.msra.mxu0 %v555
    %1375 = vmatpush.msra.mxu0 %v552
    %1376 = vmatpush.msra.mxu0 %v549
    %1377 = vmatpush.msra.mxu0 %v546
    %1378 = vmatpush.msra.mxu0 %v543
    %1379 = vmatpush.msra.mxu0 %v540
    %1380 = vmatpush.msra.mxu0 %v537
    %1381 = vmatmul.f32.gmra.mxu0 %v1343
    %v1382 = vpop.f32.mrf.mxu0
    %v1383 = vadd.f32 %v636, %v1382
    %1384 = vdwg.mxu0
    %1385 = vmatpush.msra.mxu0 %v583
    %1386 = vmatpush.msra.mxu0 %v580
    %1387 = vmatpush.msra.mxu0 %v577
    %1388 = vmatpush.msra.mxu0 %v574
    %1389 = vmatpush.msra.mxu0 %v571
    %1390 = vmatpush.msra.mxu0 %v568
    %1391 = vmatpush.msra.mxu0 %v565
    %1392 = vmatpush.msra.mxu0 %v562
    %1393 = vmatpush.msra.mxu0 %v559
    %1394 = vmatpush.msra.mxu0 %v556
    %1395 = vmatpush.msra.mxu0 %v553
    %1396 = vmatpush.msra.mxu0 %v550
    %1397 = vmatpush.msra.mxu0 %v547
    %1398 = vmatpush.msra.mxu0 %v544
    %1399 = vmatpush.msra.mxu0 %v541
    %1400 = vmatpush.msra.mxu0 %v538
    %1401 = vmatmul.f32.gmra.mxu0 %v1343
    %v1402 = vpop.f32.mrf.mxu0
    %v1403 = vadd.f32 %v637, %v1402
    %1404 = vdwg.mxu0
    %v1406 = vrot.slane %v1363, 5
    %v1408 = vadd.f32 %v530, %v1406
    %v1409 = vxor.u32 %v1408, 2147483648
    %v1410 = vmul.f32 %v1409, 1.442695
    %v1411 = vpow.pop %v1410
    %v1412 = vadd.f32 %v1411, 1.0
    %v1413 = vrcp.pop %v1412
    %v1414 = vmul.f32 %v1412, %v1413
    %v1415 = vsub.f32 1.0, %v1414
    %v1416 = vmul.f32 %v1413, %v1415
    %v1417 = vadd.f32 %v1413, %v1416
    %vm1418 = vweird.f32 %v1412
    %vm1419 = vweird.f32 %v1413
    %vm1420 = vmor %vm1418, %vm1419
    %v1421 = vsel %vm1420, %v1413, %v1417
    %v1422 = vand.u32 2147483647, %v1412
    %vm1423 = vcmp.eq.f32.partialorder %v1422, 8.507059e+37
    %v1424 = vand.u32 %v1412, 2147483648
    %v1425 = vor.u32 1.1754944e-38, %v1424
    %v1426 = vsel %vm1423, %v1425, %v1421
    %v1427 = vmul.f32 1.0, %v1426
    %v1429 = vrot.slane %v1383, 5
    %v1431 = vadd.f32 %v531, %v1429
    %v1432 = vxor.u32 %v1431, 2147483648
    %v1433 = vmul.f32 %v1432, 1.442695
    %v1434 = vpow.pop %v1433
    %v1435 = vadd.f32 %v1434, 1.0
    %v1436 = vrcp.pop %v1435
    %v1437 = vmul.f32 %v1435, %v1436
    %v1438 = vsub.f32 1.0, %v1437
    %v1439 = vmul.f32 %v1436, %v1438
    %v1440 = vadd.f32 %v1436, %v1439
    %vm1441 = vweird.f32 %v1435
    %vm1442 = vweird.f32 %v1436
    %vm1443 = vmor %vm1441, %vm1442
    %v1444 = vsel %vm1443, %v1436, %v1440
    %v1445 = vand.u32 2147483647, %v1435
    %vm1446 = vcmp.eq.f32.partialorder %v1445, 8.507059e+37
    %v1447 = vand.u32 %v1435, 2147483648
    %v1448 = vor.u32 1.1754944e-38, %v1447
    %v1449 = vsel %vm1446, %v1448, %v1444
    %v1450 = vmul.f32 1.0, %v1449
    %v1452 = vrot.slane %v1403, 5
    %v1454 = vmul.f32 %v1427, %v1452
    %v1455 = vadd.f32 %v532, %v1454
    %v1456 = vtanh.pop %v1455
    %v1457 = vsub.f32 1.0, %v1450
    %v1458 = vmul.f32 %v1457, %v1456
    %v1459 = vrot.slane %v1220, 7
    %v1461 = vmul.f32 %v1450, %v1459
    %v1462 = vadd.f32 %v1458, %v1461
    %v1464 = vrot.slane %v1341, 2
    %1466 = vmatpush.msra.mxu0 %v630
    %1467 = vmatpush.msra.mxu0 %v627
    %1468 = vmatpush.msra.mxu0 %v624
    %1469 = vmatpush.msra.mxu0 %v621
    %1470 = vmatpush.msra.mxu0 %v618
    %1471 = vmatpush.msra.mxu0 %v615
    %1472 = vmatpush.msra.mxu0 %v612
    %1473 = vmatpush.msra.mxu0 %v609
    %1474 = vmatpush.msra.mxu0 %v606
    %1475 = vmatpush.msra.mxu0 %v603
    %1476 = vmatpush.msra.mxu0 %v600
    %1477 = vmatpush.msra.mxu0 %v597
    %1478 = vmatpush.msra.mxu0 %v594
    %1479 = vmatpush.msra.mxu0 %v591
    %1480 = vmatpush.msra.mxu0 %v588
    %1481 = vmatpush.msra.mxu0 %v585
    %1482 = vmatmul.f32.gmra.mxu0 %v1464
    %v1483 = vpop.f32.mrf.mxu0
    %v1484 = vadd.f32 %v749, %v1483
    %1485 = vdwg.mxu0
    %1486 = vmatpush.msra.mxu0 %v631
    %1487 = vmatpush.msra.mxu0 %v628
    %1488 = vmatpush.msra.mxu0 %v625
    %1489 = vmatpush.msra.mxu0 %v622
    %1490 = vmatpush.msra.mxu0 %v619
    %1491 = vmatpush.msra.mxu0 %v616
    %1492 = vmatpush.msra.mxu0 %v613
    %1493 = vmatpush.msra.mxu0 %v610
    %1494 = vmatpush.msra.mxu0 %v607
    %1495 = vmatpush.msra.mxu0 %v604
    %1496 = vmatpush.msra.mxu0 %v601
    %1497 = vmatpush.msra.mxu0 %v598
    %1498 = vmatpush.msra.mxu0 %v595
    %1499 = vmatpush.msra.mxu0 %v592
    %1500 = vmatpush.msra.mxu0 %v589
    %1501 = vmatpush.msra.mxu0 %v586
    %1502 = vmatmul.f32.gmra.mxu0 %v1464
    %v1503 = vpop.f32.mrf.mxu0
    %v1504 = vadd.f32 %v750, %v1503
    %1505 = vdwg.mxu0
    %1506 = vmatpush.msra.mxu0 %v632
    %1507 = vmatpush.msra.mxu0 %v629
    %1508 = vmatpush.msra.mxu0 %v626
    %1509 = vmatpush.msra.mxu0 %v623
    %1510 = vmatpush.msra.mxu0 %v620
    %1511 = vmatpush.msra.mxu0 %v617
    %1512 = vmatpush.msra.mxu0 %v614
    %1513 = vmatpush.msra.mxu0 %v611
    %1514 = vmatpush.msra.mxu0 %v608
    %1515 = vmatpush.msra.mxu0 %v605
    %1516 = vmatpush.msra.mxu0 %v602
    %1517 = vmatpush.msra.mxu0 %v599
    %1518 = vmatpush.msra.mxu0 %v596
    %1519 = vmatpush.msra.mxu0 %v593
    %1520 = vmatpush.msra.mxu0 %v590
    %1521 = vmatpush.msra.mxu0 %v587
    %1522 = vmatmul.f32.gmra.mxu0 %v1464
    %v1523 = vpop.f32.mrf.mxu0
    %v1524 = vadd.f32 %v751, %v1523
    %1525 = vdwg.mxu0
    %v1527 = vrot.slane %v1484, 5
    %v1529 = vadd.f32 %v533, %v1527
    %v1530 = vxor.u32 %v1529, 2147483648
    %v1531 = vmul.f32 %v1530, 1.442695
    %v1532 = vpow.pop %v1531
    %v1533 = vadd.f32 %v1532, 1.0
    %v1534 = vrcp.pop %v1533
    %v1535 = vmul.f32 %v1533, %v1534
    %v1536 = vsub.f32 1.0, %v1535
    %v1537 = vmul.f32 %v1534, %v1536
    %v1538 = vadd.f32 %v1534, %v1537
    %vm1539 = vweird.f32 %v1533
    %vm1540 = vweird.f32 %v1534
    %vm1541 = vmor %vm1539, %vm1540
    %v1542 = vsel %vm1541, %v1534, %v1538
    %v1543 = vand.u32 2147483647, %v1533
    %vm1544 = vcmp.eq.f32.partialorder %v1543, 8.507059e+37
    %v1545 = vand.u32 %v1533, 2147483648
    %v1546 = vor.u32 1.1754944e-38, %v1545
    %v1547 = vsel %vm1544, %v1546, %v1542
    %v1548 = vmul.f32 1.0, %v1547
    %v1550 = vrot.slane %v1504, 5
    %v1552 = vadd.f32 %v534, %v1550
    %v1553 = vxor.u32 %v1552, 2147483648
    %v1554 = vmul.f32 %v1553, 1.442695
    %v1555 = vpow.pop %v1554
    %v1556 = vadd.f32 %v1555, 1.0
    %v1557 = vrcp.pop %v1556
    %v1558 = vmul.f32 %v1556, %v1557
    %v1559 = vsub.f32 1.0, %v1558
    %v1560 = vmul.f32 %v1557, %v1559
    %v1561 = vadd.f32 %v1557, %v1560
    %vm1562 = vweird.f32 %v1556
    %vm1563 = vweird.f32 %v1557
    %vm1564 = vmor %vm1562, %vm1563
    %v1565 = vsel %vm1564, %v1557, %v1561
    %v1566 = vand.u32 2147483647, %v1556
    %vm1567 = vcmp.eq.f32.partialorder %v1566, 8.507059e+37
    %v1568 = vand.u32 %v1556, 2147483648
    %v1569 = vor.u32 1.1754944e-38, %v1568
    %v1570 = vsel %vm1567, %v1569, %v1565
    %v1571 = vmul.f32 1.0, %v1570
    %v1573 = vrot.slane %v1524, 5
    %v1575 = vmul.f32 %v1548, %v1573
    %v1576 = vadd.f32 %v535, %v1575
    %v1577 = vtanh.pop %v1576
    %v1578 = vsub.f32 1.0, %v1571
    %v1579 = vmul.f32 %v1578, %v1577
    %v1580 = vrot.slane %v1341, 7
    %v1582 = vmul.f32 %v1571, %v1580
    %v1583 = vadd.f32 %v1579, %v1582
    %v1585 = vrot.slane %v1462, 3
    %1587 = vmatpush.msra.mxu0 %v581
    %1588 = vmatpush.msra.mxu0 %v578
    %1589 = vmatpush.msra.mxu0 %v575
    %1590 = vmatpush.msra.mxu0 %v572
    %1591 = vmatpush.msra.mxu0 %v569
    %1592 = vmatpush.msra.mxu0 %v566
    %1593 = vmatpush.msra.mxu0 %v563
    %1594 = vmatpush.msra.mxu0 %v560
    %1595 = vmatpush.msra.mxu0 %v557
    %1596 = vmatpush.msra.mxu0 %v554
    %1597 = vmatpush.msra.mxu0 %v551
    %1598 = vmatpush.msra.mxu0 %v548
    %1599 = vmatpush.msra.mxu0 %v545
    %1600 = vmatpush.msra.mxu0 %v542
    %1601 = vmatpush.msra.mxu0 %v539
    %1602 = vmatpush.msra.mxu0 %v536
    %1603 = vmatmul.f32.gmra.mxu0 %v1585
    %v1604 = vpop.f32.mrf.mxu0
    %v1605 = vadd.f32 %v635, %v1604
    %1606 = vdwg.mxu0
    %1607 = vmatpush.msra.mxu0 %v582
    %1608 = vmatpush.msra.mxu0 %v579
    %1609 = vmatpush.msra.mxu0 %v576
    %1610 = vmatpush.msra.mxu0 %v573
    %1611 = vmatpush.msra.mxu0 %v570
    %1612 = vmatpush.msra.mxu0 %v567
    %1613 = vmatpush.msra.mxu0 %v564
    %1614 = vmatpush.msra.mxu0 %v561
    %1615 = vmatpush.msra.mxu0 %v558
    %1616 = vmatpush.msra.mxu0 %v555
    %1617 = vmatpush.msra.mxu0 %v552
    %1618 = vmatpush.msra.mxu0 %v549
    %1619 = vmatpush.msra.mxu0 %v546
    %1620 = vmatpush.msra.mxu0 %v543
    %1621 = vmatpush.msra.mxu0 %v540
    %1622 = vmatpush.msra.mxu0 %v537
    %1623 = vmatmul.f32.gmra.mxu0 %v1585
    %v1624 = vpop.f32.mrf.mxu0
    %v1625 = vadd.f32 %v636, %v1624
    %1626 = vdwg.mxu0
    %1627 = vmatpush.msra.mxu0 %v583
    %1628 = vmatpush.msra.mxu0 %v580
    %1629 = vmatpush.msra.mxu0 %v577
    %1630 = vmatpush.msra.mxu0 %v574
    %1631 = vmatpush.msra.mxu0 %v571
    %1632 = vmatpush.msra.mxu0 %v568
    %1633 = vmatpush.msra.mxu0 %v565
    %1634 = vmatpush.msra.mxu0 %v562
    %1635 = vmatpush.msra.mxu0 %v559
    %1636 = vmatpush.msra.mxu0 %v556
    %1637 = vmatpush.msra.mxu0 %v553
    %1638 = vmatpush.msra.mxu0 %v550
    %1639 = vmatpush.msra.mxu0 %v547
    %1640 = vmatpush.msra.mxu0 %v544
    %1641 = vmatpush.msra.mxu0 %v541
    %1642 = vmatpush.msra.mxu0 %v538
    %1643 = vmatmul.f32.gmra.mxu0 %v1585
    %v1644 = vpop.f32.mrf.mxu0
    %v1645 = vadd.f32 %v637, %v1644
    %1646 = vdwg.mxu0
    %v1648 = vrot.slane %v1605, 4
    %v1650 = vadd.f32 %v530, %v1648
    %v1651 = vxor.u32 %v1650, 2147483648
    %v1652 = vmul.f32 %v1651, 1.442695
    %v1653 = vpow.pop %v1652
    %v1654 = vadd.f32 %v1653, 1.0
    %v1655 = vrcp.pop %v1654
    %v1656 = vmul.f32 %v1654, %v1655
    %v1657 = vsub.f32 1.0, %v1656
    %v1658 = vmul.f32 %v1655, %v1657
    %v1659 = vadd.f32 %v1655, %v1658
    %vm1660 = vweird.f32 %v1654
    %vm1661 = vweird.f32 %v1655
    %vm1662 = vmor %vm1660, %vm1661
    %v1663 = vsel %vm1662, %v1655, %v1659
    %v1664 = vand.u32 2147483647, %v1654
    %vm1665 = vcmp.eq.f32.partialorder %v1664, 8.507059e+37
    %v1666 = vand.u32 %v1654, 2147483648
    %v1667 = vor.u32 1.1754944e-38, %v1666
    %v1668 = vsel %vm1665, %v1667, %v1663
    %v1669 = vmul.f32 1.0, %v1668
    %v1671 = vrot.slane %v1625, 4
    %v1673 = vadd.f32 %v531, %v1671
    %v1674 = vxor.u32 %v1673, 2147483648
    %v1675 = vmul.f32 %v1674, 1.442695
    %v1676 = vpow.pop %v1675
    %v1677 = vadd.f32 %v1676, 1.0
    %v1678 = vrcp.pop %v1677
    %v1679 = vmul.f32 %v1677, %v1678
    %v1680 = vsub.f32 1.0, %v1679
    %v1681 = vmul.f32 %v1678, %v1680
    %v1682 = vadd.f32 %v1678, %v1681
    %vm1683 = vweird.f32 %v1677
    %vm1684 = vweird.f32 %v1678
    %vm1685 = vmor %vm1683, %vm1684
    %v1686 = vsel %vm1685, %v1678, %v1682
    %v1687 = vand.u32 2147483647, %v1677
    %vm1688 = vcmp.eq.f32.partialorder %v1687, 8.507059e+37
    %v1689 = vand.u32 %v1677, 2147483648
    %v1690 = vor.u32 1.1754944e-38, %v1689
    %v1691 = vsel %vm1688, %v1690, %v1686
    %v1692 = vmul.f32 1.0, %v1691
    %v1694 = vrot.slane %v1645, 4
    %v1696 = vmul.f32 %v1669, %v1694
    %v1697 = vadd.f32 %v532, %v1696
    %v1698 = vtanh.pop %v1697
    %v1699 = vsub.f32 1.0, %v1692
    %v1700 = vmul.f32 %v1699, %v1698
    %v1701 = vrot.slane %v1462, 7
    %v1703 = vmul.f32 %v1692, %v1701
    %v1704 = vadd.f32 %v1700, %v1703
    %v1706 = vrot.slane %v1704, 4
    %1708 = vmatpush.msra.mxu0 %v581
    %1709 = vmatpush.msra.mxu0 %v578
    %1710 = vmatpush.msra.mxu0 %v575
    %1711 = vmatpush.msra.mxu0 %v572
    %1712 = vmatpush.msra.mxu0 %v569
    %1713 = vmatpush.msra.mxu0 %v566
    %1714 = vmatpush.msra.mxu0 %v563
    %1715 = vmatpush.msra.mxu0 %v560
    %1716 = vmatpush.msra.mxu0 %v557
    %1717 = vmatpush.msra.mxu0 %v554
    %1718 = vmatpush.msra.mxu0 %v551
    %1719 = vmatpush.msra.mxu0 %v548
    %1720 = vmatpush.msra.mxu0 %v545
    %1721 = vmatpush.msra.mxu0 %v542
    %1722 = vmatpush.msra.mxu0 %v539
    %1723 = vmatpush.msra.mxu0 %v536
    %1724 = vmatmul.f32.gmra.mxu0 %v1706
    %v1725 = vpop.f32.mrf.mxu0
    %v1726 = vadd.f32 %v635, %v1725
    %1727 = vdwg.mxu0
    %1728 = vmatpush.msra.mxu0 %v582
    %1729 = vmatpush.msra.mxu0 %v579
    %1730 = vmatpush.msra.mxu0 %v576
    %1731 = vmatpush.msra.mxu0 %v573
    %1732 = vmatpush.msra.mxu0 %v570
    %1733 = vmatpush.msra.mxu0 %v567
    %1734 = vmatpush.msra.mxu0 %v564
    %1735 = vmatpush.msra.mxu0 %v561
    %1736 = vmatpush.msra.mxu0 %v558
    %1737 = vmatpush.msra.mxu0 %v555
    %1738 = vmatpush.msra.mxu0 %v552
    %1739 = vmatpush.msra.mxu0 %v549
    %1740 = vmatpush.msra.mxu0 %v546
    %1741 = vmatpush.msra.mxu0 %v543
    %1742 = vmatpush.msra.mxu0 %v540
    %1743 = vmatpush.msra.mxu0 %v537
    %1744 = vmatmul.f32.gmra.mxu0 %v1706
    %v1745 = vpop.f32.mrf.mxu0
    %v1746 = vadd.f32 %v636, %v1745
    %1747 = vdwg.mxu0
    %1748 = vmatpush.msra.mxu0 %v583
    %1749 = vmatpush.msra.mxu0 %v580
    %1750 = vmatpush.msra.mxu0 %v577
    %1751 = vmatpush.msra.mxu0 %v574
    %1752 = vmatpush.msra.mxu0 %v571
    %1753 = vmatpush.msra.mxu0 %v568
    %1754 = vmatpush.msra.mxu0 %v565
    %1755 = vmatpush.msra.mxu0 %v562
    %1756 = vmatpush.msra.mxu0 %v559
    %1757 = vmatpush.msra.mxu0 %v556
    %1758 = vmatpush.msra.mxu0 %v553
    %1759 = vmatpush.msra.mxu0 %v550
    %1760 = vmatpush.msra.mxu0 %v547
    %1761 = vmatpush.msra.mxu0 %v544
    %1762 = vmatpush.msra.mxu0 %v541
    %1763 = vmatpush.msra.mxu0 %v538
    %1764 = vmatmul.f32.gmra.mxu0 %v1706
    %v1765 = vpop.f32.mrf.mxu0
    %v1766 = vadd.f32 %v637, %v1765
    %1767 = vdwg.mxu0
    %v1769 = vrot.slane %v1726, 3
    %v1771 = vadd.f32 %v530, %v1769
    %v1772 = vxor.u32 %v1771, 2147483648
    %v1773 = vmul.f32 %v1772, 1.442695
    %v1774 = vpow.pop %v1773
    %v1775 = vadd.f32 %v1774, 1.0
    %v1776 = vrcp.pop %v1775
    %v1777 = vmul.f32 %v1775, %v1776
    %v1778 = vsub.f32 1.0, %v1777
    %v1779 = vmul.f32 %v1776, %v1778
    %v1780 = vadd.f32 %v1776, %v1779
    %vm1781 = vweird.f32 %v1775
    %vm1782 = vweird.f32 %v1776
    %vm1783 = vmor %vm1781, %vm1782
    %v1784 = vsel %vm1783, %v1776, %v1780
    %v1785 = vand.u32 2147483647, %v1775
    %vm1786 = vcmp.eq.f32.partialorder %v1785, 8.507059e+37
    %v1787 = vand.u32 %v1775, 2147483648
    %v1788 = vor.u32 1.1754944e-38, %v1787
    %v1789 = vsel %vm1786, %v1788, %v1784
    %v1790 = vmul.f32 1.0, %v1789
    %v1792 = vrot.slane %v1746, 3
    %v1794 = vadd.f32 %v531, %v1792
    %v1795 = vxor.u32 %v1794, 2147483648
    %v1796 = vmul.f32 %v1795, 1.442695
    %v1797 = vpow.pop %v1796
    %v1798 = vadd.f32 %v1797, 1.0
    %v1799 = vrcp.pop %v1798
    %v1800 = vmul.f32 %v1798, %v1799
    %v1801 = vsub.f32 1.0, %v1800
    %v1802 = vmul.f32 %v1799, %v1801
    %v1803 = vadd.f32 %v1799, %v1802
    %vm1804 = vweird.f32 %v1798
    %vm1805 = vweird.f32 %v1799
    %vm1806 = vmor %vm1804, %vm1805
    %v1807 = vsel %vm1806, %v1799, %v1803
    %v1808 = vand.u32 2147483647, %v1798
    %vm1809 = vcmp.eq.f32.partialorder %v1808, 8.507059e+37
    %v1810 = vand.u32 %v1798, 2147483648
    %v1811 = vor.u32 1.1754944e-38, %v1810
    %v1812 = vsel %vm1809, %v1811, %v1807
    %v1813 = vmul.f32 1.0, %v1812
    %v1815 = vrot.slane %v1766, 3
    %v1817 = vmul.f32 %v1790, %v1815
    %v1818 = vadd.f32 %v532, %v1817
    %v1819 = vtanh.pop %v1818
    %v1820 = vsub.f32 1.0, %v1813
    %v1821 = vmul.f32 %v1820, %v1819
    %v1822 = vrot.slane %v1704, 7
    %v1824 = vmul.f32 %v1813, %v1822
    %v1825 = vadd.f32 %v1821, %v1824
    %v1827 = vrot.slane %v1825, 5
    %1829 = vmatpush.msra.mxu0 %v581
    %1830 = vmatpush.msra.mxu0 %v578
    %1831 = vmatpush.msra.mxu0 %v575
    %1832 = vmatpush.msra.mxu0 %v572
    %1833 = vmatpush.msra.mxu0 %v569
    %1834 = vmatpush.msra.mxu0 %v566
    %1835 = vmatpush.msra.mxu0 %v563
    %1836 = vmatpush.msra.mxu0 %v560
    %1837 = vmatpush.msra.mxu0 %v557
    %1838 = vmatpush.msra.mxu0 %v554
    %1839 = vmatpush.msra.mxu0 %v551
    %1840 = vmatpush.msra.mxu0 %v548
    %1841 = vmatpush.msra.mxu0 %v545
    %1842 = vmatpush.msra.mxu0 %v542
    %1843 = vmatpush.msra.mxu0 %v539
    %1844 = vmatpush.msra.mxu0 %v536
    %1845 = vmatmul.f32.gmra.mxu0 %v1827
    %v1846 = vpop.f32.mrf.mxu0
    %v1847 = vadd.f32 %v635, %v1846
    %1848 = vdwg.mxu0
    %1849 = vmatpush.msra.mxu0 %v582
    %1850 = vmatpush.msra.mxu0 %v579
    %1851 = vmatpush.msra.mxu0 %v576
    %1852 = vmatpush.msra.mxu0 %v573
    %1853 = vmatpush.msra.mxu0 %v570
    %1854 = vmatpush.msra.mxu0 %v567
    %1855 = vmatpush.msra.mxu0 %v564
    %1856 = vmatpush.msra.mxu0 %v561
    %1857 = vmatpush.msra.mxu0 %v558
    %1858 = vmatpush.msra.mxu0 %v555
    %1859 = vmatpush.msra.mxu0 %v552
    %1860 = vmatpush.msra.mxu0 %v549
    %1861 = vmatpush.msra.mxu0 %v546
    %1862 = vmatpush.msra.mxu0 %v543
    %1863 = vmatpush.msra.mxu0 %v540
    %1864 = vmatpush.msra.mxu0 %v537
    %1865 = vmatmul.f32.gmra.mxu0 %v1827
    %v1866 = vpop.f32.mrf.mxu0
    %v1867 = vadd.f32 %v636, %v1866
    %1868 = vdwg.mxu0
    %1869 = vmatpush.msra.mxu0 %v583
    %1870 = vmatpush.msra.mxu0 %v580
    %1871 = vmatpush.msra.mxu0 %v577
    %1872 = vmatpush.msra.mxu0 %v574
    %1873 = vmatpush.msra.mxu0 %v571
    %1874 = vmatpush.msra.mxu0 %v568
    %1875 = vmatpush.msra.mxu0 %v565
    %1876 = vmatpush.msra.mxu0 %v562
    %1877 = vmatpush.msra.mxu0 %v559
    %1878 = vmatpush.msra.mxu0 %v556
    %1879 = vmatpush.msra.mxu0 %v553
    %1880 = vmatpush.msra.mxu0 %v550
    %1881 = vmatpush.msra.mxu0 %v547
    %1882 = vmatpush.msra.mxu0 %v544
    %1883 = vmatpush.msra.mxu0 %v541
    %1884 = vmatpush.msra.mxu0 %v538
    %1885 = vmatmul.f32.gmra.mxu0 %v1827
    %v1886 = vpop.f32.mrf.mxu0
    %v1887 = vadd.f32 %v637, %v1886
    %1888 = vdwg.mxu0
    %v1890 = vrot.slane %v1847, 2
    %v1892 = vadd.f32 %v530, %v1890
    %v1893 = vxor.u32 %v1892, 2147483648
    %v1894 = vmul.f32 %v1893, 1.442695
    %v1895 = vpow.pop %v1894
    %v1896 = vadd.f32 %v1895, 1.0
    %v1897 = vrcp.pop %v1896
    %v1898 = vmul.f32 %v1896, %v1897
    %v1899 = vsub.f32 1.0, %v1898
    %v1900 = vmul.f32 %v1897, %v1899
    %v1901 = vadd.f32 %v1897, %v1900
    %vm1902 = vweird.f32 %v1896
    %vm1903 = vweird.f32 %v1897
    %vm1904 = vmor %vm1902, %vm1903
    %v1905 = vsel %vm1904, %v1897, %v1901
    %v1906 = vand.u32 2147483647, %v1896
    %vm1907 = vcmp.eq.f32.partialorder %v1906, 8.507059e+37
    %v1908 = vand.u32 %v1896, 2147483648
    %v1909 = vor.u32 1.1754944e-38, %v1908
    %v1910 = vsel %vm1907, %v1909, %v1905
    %v1911 = vmul.f32 1.0, %v1910
    %v1913 = vrot.slane %v1867, 2
    %v1915 = vadd.f32 %v531, %v1913
    %v1916 = vxor.u32 %v1915, 2147483648
    %v1917 = vmul.f32 %v1916, 1.442695
    %v1918 = vpow.pop %v1917
    %v1919 = vadd.f32 %v1918, 1.0
    %v1920 = vrcp.pop %v1919
    %v1921 = vmul.f32 %v1919, %v1920
    %v1922 = vsub.f32 1.0, %v1921
    %v1923 = vmul.f32 %v1920, %v1922
    %v1924 = vadd.f32 %v1920, %v1923
    %vm1925 = vweird.f32 %v1919
    %vm1926 = vweird.f32 %v1920
    %vm1927 = vmor %vm1925, %vm1926
    %v1928 = vsel %vm1927, %v1920, %v1924
    %v1929 = vand.u32 2147483647, %v1919
    %vm1930 = vcmp.eq.f32.partialorder %v1929, 8.507059e+37
    %v1931 = vand.u32 %v1919, 2147483648
    %v1932 = vor.u32 1.1754944e-38, %v1931
    %v1933 = vsel %vm1930, %v1932, %v1928
    %v1934 = vmul.f32 1.0, %v1933
    %v1936 = vrot.slane %v1887, 2
    %v1938 = vmul.f32 %v1911, %v1936
    %v1939 = vadd.f32 %v532, %v1938
    %v1940 = vtanh.pop %v1939
    %v1941 = vsub.f32 1.0, %v1934
    %v1942 = vmul.f32 %v1941, %v1940
    %v1943 = vrot.slane %v1825, 7
    %v1945 = vmul.f32 %v1934, %v1943
    %v1946 = vadd.f32 %v1942, %v1945
    %v1948 = vrot.slane %v1946, 6
    %1950 = vmatpush.msra.mxu0 %v581
    %1951 = vmatpush.msra.mxu0 %v578
    %1952 = vmatpush.msra.mxu0 %v575
    %1953 = vmatpush.msra.mxu0 %v572
    %1954 = vmatpush.msra.mxu0 %v569
    %1955 = vmatpush.msra.mxu0 %v566
    %1956 = vmatpush.msra.mxu0 %v563
    %1957 = vmatpush.msra.mxu0 %v560
    %1958 = vmatpush.msra.mxu0 %v557
    %1959 = vmatpush.msra.mxu0 %v554
    %1960 = vmatpush.msra.mxu0 %v551
    %1961 = vmatpush.msra.mxu0 %v548
    %1962 = vmatpush.msra.mxu0 %v545
    %1963 = vmatpush.msra.mxu0 %v542
    %1964 = vmatpush.msra.mxu0 %v539
    %1965 = vmatpush.msra.mxu0 %v536
    %1966 = vmatmul.f32.gmra.mxu0 %v1948
    %v1967 = vpop.f32.mrf.mxu0
    %v1968 = vadd.f32 %v635, %v1967
    %1969 = vdwg.mxu0
    %1970 = vmatpush.msra.mxu0 %v582
    %1971 = vmatpush.msra.mxu0 %v579
    %1972 = vmatpush.msra.mxu0 %v576
    %1973 = vmatpush.msra.mxu0 %v573
    %1974 = vmatpush.msra.mxu0 %v570
    %1975 = vmatpush.msra.mxu0 %v567
    %1976 = vmatpush.msra.mxu0 %v564
    %1977 = vmatpush.msra.mxu0 %v561
    %1978 = vmatpush.msra.mxu0 %v558
    %1979 = vmatpush.msra.mxu0 %v555
    %1980 = vmatpush.msra.mxu0 %v552
    %1981 = vmatpush.msra.mxu0 %v549
    %1982 = vmatpush.msra.mxu0 %v546
    %1983 = vmatpush.msra.mxu0 %v543
    %1984 = vmatpush.msra.mxu0 %v540
    %1985 = vmatpush.msra.mxu0 %v537
    %1986 = vmatmul.f32.gmra.mxu0 %v1948
    %v1987 = vpop.f32.mrf.mxu0
    %v1988 = vadd.f32 %v636, %v1987
    %1989 = vdwg.mxu0
    %1990 = vmatpush.msra.mxu0 %v583
    %1991 = vmatpush.msra.mxu0 %v580
    %1992 = vmatpush.msra.mxu0 %v577
    %1993 = vmatpush.msra.mxu0 %v574
    %1994 = vmatpush.msra.mxu0 %v571
    %1995 = vmatpush.msra.mxu0 %v568
    %1996 = vmatpush.msra.mxu0 %v565
    %1997 = vmatpush.msra.mxu0 %v562
    %1998 = vmatpush.msra.mxu0 %v559
    %1999 = vmatpush.msra.mxu0 %v556
    %2000 = vmatpush.msra.mxu0 %v553
    %2001 = vmatpush.msra.mxu0 %v550
    %2002 = vmatpush.msra.mxu0 %v547
    %2003 = vmatpush.msra.mxu0 %v544
    %2004 = vmatpush.msra.mxu0 %v541
    %2005 = vmatpush.msra.mxu0 %v538
    %2006 = vmatmul.f32.gmra.mxu0 %v1948
    %v2007 = vpop.f32.mrf.mxu0
    %v2008 = vadd.f32 %v637, %v2007
    %2009 = vdwg.mxu0
    %v2011 = vrot.slane %v1968, 1
    %v2013 = vadd.f32 %v530, %v2011
    %v2014 = vxor.u32 %v2013, 2147483648
    %v2015 = vmul.f32 %v2014, 1.442695
    %v2016 = vpow.pop %v2015
    %v2017 = vadd.f32 %v2016, 1.0
    %v2018 = vrcp.pop %v2017
    %v2019 = vmul.f32 %v2017, %v2018
    %v2020 = vsub.f32 1.0, %v2019
    %v2021 = vmul.f32 %v2018, %v2020
    %v2022 = vadd.f32 %v2018, %v2021
    %vm2023 = vweird.f32 %v2017
    %vm2024 = vweird.f32 %v2018
    %vm2025 = vmor %vm2023, %vm2024
    %v2026 = vsel %vm2025, %v2018, %v2022
    %v2027 = vand.u32 2147483647, %v2017
    %vm2028 = vcmp.eq.f32.partialorder %v2027, 8.507059e+37
    %v2029 = vand.u32 %v2017, 2147483648
    %v2030 = vor.u32 1.1754944e-38, %v2029
    %v2031 = vsel %vm2028, %v2030, %v2026
    %v2032 = vmul.f32 1.0, %v2031
    %v2034 = vrot.slane %v1988, 1
    %v2036 = vadd.f32 %v531, %v2034
    %v2037 = vxor.u32 %v2036, 2147483648
    %v2038 = vmul.f32 %v2037, 1.442695
    %v2039 = vpow.pop %v2038
    %v2040 = vadd.f32 %v2039, 1.0
    %v2041 = vrcp.pop %v2040
    %v2042 = vmul.f32 %v2040, %v2041
    %v2043 = vsub.f32 1.0, %v2042
    %v2044 = vmul.f32 %v2041, %v2043
    %v2045 = vadd.f32 %v2041, %v2044
    %vm2046 = vweird.f32 %v2040
    %vm2047 = vweird.f32 %v2041
    %vm2048 = vmor %vm2046, %vm2047
    %v2049 = vsel %vm2048, %v2041, %v2045
    %v2050 = vand.u32 2147483647, %v2040
    %vm2051 = vcmp.eq.f32.partialorder %v2050, 8.507059e+37
    %v2052 = vand.u32 %v2040, 2147483648
    %v2053 = vor.u32 1.1754944e-38, %v2052
    %v2054 = vsel %vm2051, %v2053, %v2049
    %v2055 = vmul.f32 1.0, %v2054
    %v2057 = vrot.slane %v2008, 1
    %v2059 = vmul.f32 %v2032, %v2057
    %v2060 = vadd.f32 %v532, %v2059
    %v2061 = vtanh.pop %v2060
    %v2062 = vsub.f32 1.0, %v2055
    %v2063 = vmul.f32 %v2062, %v2061
    %v2064 = vrot.slane %v1946, 7
    %v2066 = vmul.f32 %v2055, %v2064
    %v2067 = vadd.f32 %v2063, %v2066
    %vm2068 = vcmask 1040384
    %v2069 = vsel %vm2068, %v747, %v980
    %vm2070 = vcmask 1041408
    %v2071 = vsel %vm2070, %v2069, %v1220
    %vm2072 = vcmask 1042432
    %v2073 = vsel %vm2072, %v2071, %v1462
    %vm2074 = vcmask 1043456
    %v2075 = vsel %vm2074, %v2073, %v1704
    %vm2076 = vcmask 1044480
    %v2077 = vsel %vm2076, %v2075, %v1825
    %vm2078 = vcmask 1045504
    %v2079 = vsel %vm2078, %v2077, %v1946
    %vm2080 = vcmask 1046528
    %v2081 = vsel %vm2080, %v2079, %v2067
    %v2082 = vsel %vm2068, %v861, %v1099
    %v2083 = vsel %vm2070, %v2082, %v1341
    %v2084 = vsel %vm2072, %v2083, %v1583
    %v2085 = vsel %vm2074, %v2084, 0.0
    %2086 = vmatpush.xpose.msra.mxu0 0.0
    %2087 = vmatpush.xpose.msra.mxu0 0.0
    %2088 = vmatpush.xpose.msra.mxu0 0.0
    %2089 = vmatpush.xpose.msra.mxu0 0.0
    %2090 = vmatpush.xpose.msra.mxu0 0.0
    %2091 = vmatpush.xpose.msra.mxu0 0.0
    %2092 = vmatpush.xpose.msra.mxu0 0.0
    %2093 = vmatpush.xpose.msra.mxu0 0.0
    %2094 = vmatpush.xpose.msra.mxu0 0.0
    %2095 = vmatpush.xpose.msra.mxu0 0.0
    %2096 = vmatpush.xpose.msra.mxu0 0.0
    %2097 = vmatpush.xpose.msra.mxu0 0.0
    %2098 = vmatpush.xpose.msra.mxu0 0.0
    %2099 = vmatpush.xpose.msra.mxu0 0.0
    %2100 = vmatpush.xpose.msra.mxu0 0.0
    %2101 = vmatpush.xpose.msra.mxu0 %v2081
    %2102 = vmatmul.f32.gmra.mxu0 %v2085
    %v2103 = vpop.f32.mrf.mxu0
    %v2104 = vadd.f32 0.0, %v2103
    %2105 = vdwg.mxu0
    %vm2106 = vcmask 64512
    %v2107 = vsel %vm2106, %v2104, -inf
    %2108 = vmax.xlane.f32.xlu0 %v2107
    %v2109 = vpop.xlane.xlu0 %2108
    %v2110 = vsub.f32 %v2104, %v2109
    %v2111 = vmul.f32 %v2110, 1.442695
    %v2112 = vpow.pop %v2111
    %v2113 = vsel %vm2106, %v2112, 0.0
    %2114 = vadd.xlane.f32.xlu0 %v2113
    %v2115 = vpop.xlane.xlu0 %2114
    %v2116 = vrcp.pop %v2115
    %v2117 = vmul.f32 %v2115, %v2116
    %v2118 = vsub.f32 1.0, %v2117
    %v2119 = vmul.f32 %v2116, %v2118
    %v2120 = vadd.f32 %v2116, %v2119
    %vm2121 = vweird.f32 %v2115
    %vm2122 = vweird.f32 %v2116
    %vm2123 = vmor %vm2121, %vm2122
    %v2124 = vsel %vm2123, %v2116, %v2120
    %v2125 = vand.u32 2147483647, %v2115
    %vm2126 = vcmp.eq.f32.partialorder %v2125, 8.507059e+37
    %v2127 = vand.u32 %v2115, 2147483648
    %v2128 = vor.u32 1.1754944e-38, %v2127
    %v2129 = vsel %vm2126, %v2128, %v2124
    %v2130 = vmul.f32 %v2112, %v2129
    %v2132 = vsel %vm2106, %v2130, 0
    %2134 = vmatpush.msra.mxu0 0.0
    %2135 = vmatpush.msra.mxu0 0.0
    %2136 = vmatpush.msra.mxu0 0.0
    %2137 = vmatpush.msra.mxu0 0.0
    %2138 = vmatpush.msra.mxu0 0.0
    %2139 = vmatpush.msra.mxu0 0.0
    %2140 = vmatpush.msra.mxu0 0.0
    %2141 = vmatpush.msra.mxu0 0.0
    %2142 = vmatpush.msra.mxu0 0.0
    %2143 = vmatpush.msra.mxu0 0.0
    %2144 = vmatpush.msra.mxu0 0.0
    %2145 = vmatpush.msra.mxu0 0.0
    %2146 = vmatpush.msra.mxu0 0.0
    %2147 = vmatpush.msra.mxu0 0.0
    %2148 = vmatpush.msra.mxu0 0.0
    %2149 = vmatpush.msra.mxu0 %v2081
    %2150 = vmatmul.f32.gmra.mxu0 %v2132
    %v2151 = vpop.f32.mrf.mxu0
    %v2152 = vadd.f32 0.0, %v2151
    %2153 = vdwg.mxu0
    %v2154 = vld [vmem:[#allocation6] sm:$0xff]
    %v2155 = vld [vmem:[#allocation6 + $0x8] sm:$0xff]
    %v2156 = vld [vmem:[#allocation6 + $0x10] sm:$0xff]
    %v2157 = vld [vmem:[#allocation6 + $0x18] sm:$0xff]
    %v2158 = vld [vmem:[#allocation6 + $0x20] sm:$0xff]
    %v2159 = vld [vmem:[#allocation6 + $0x28] sm:$0xff]
    %v2160 = vld [vmem:[#allocation6 + $0x30] sm:$0xff]
    %v2161 = vld [vmem:[#allocation6 + $0x38] sm:$0xff]
    %v2162 = vld [vmem:[#allocation6 + $0x40] sm:$0xff]
    %v2163 = vld [vmem:[#allocation6 + $0x48] sm:$0xff]
    %v2164 = vld [vmem:[#allocation6 + $0x50] sm:$0xff]
    %v2165 = vld [vmem:[#allocation6 + $0x58] sm:$0xff]
    %v2166 = vld [vmem:[#allocation6 + $0x60] sm:$0xff]
    %v2167 = vld [vmem:[#allocation6 + $0x68] sm:$0xff]
    %v2168 = vld [vmem:[#allocation6 + $0x70] sm:$0xff]
    %v2169 = vld [vmem:[#allocation6 + $0x78] sm:$0xff]
    %v2170 = vld [vmem:[#allocation7] sm:$0xff]
    %v2171 = vld [vmem:[#allocation7 + $0x8] sm:$0xff]
    %v2172 = vld [vmem:[#allocation7 + $0x10] sm:$0xff]
    %v2173 = vld [vmem:[#allocation7 + $0x18] sm:$0xff]
    %v2174 = vld [vmem:[#allocation7 + $0x20] sm:$0xff]
    %v2175 = vld [vmem:[#allocation7 + $0x28] sm:$0xff]
    %v2176 = vld [vmem:[#allocation7 + $0x30] sm:$0xff]
    %v2177 = vld [vmem:[#allocation7 + $0x38] sm:$0xff]
    %v2178 = vld [vmem:[#allocation7 + $0x40] sm:$0xff]
    %v2179 = vld [vmem:[#allocation7 + $0x48] sm:$0xff]
    %v2180 = vld [vmem:[#allocation7 + $0x50] sm:$0xff]
    %v2181 = vld [vmem:[#allocation7 + $0x58] sm:$0xff]
    %v2182 = vld [vmem:[#allocation7 + $0x60] sm:$0xff]
    %v2183 = vld [vmem:[#allocation7 + $0x68] sm:$0xff]
    %v2184 = vld [vmem:[#allocation7 + $0x70] sm:$0xff]
    %v2185 = vld [vmem:[#allocation7 + $0x78] sm:$0xff]
    %2186 = vmatpush.msra.mxu0 %v2185
    %2187 = vmatpush.msra.mxu0 %v2184
    %2188 = vmatpush.msra.mxu0 %v2183
    %2189 = vmatpush.msra.mxu0 %v2182
    %2190 = vmatpush.msra.mxu0 %v2181
    %2191 = vmatpush.msra.mxu0 %v2180
    %2192 = vmatpush.msra.mxu0 %v2179
    %2193 = vmatpush.msra.mxu0 %v2178
    %2194 = vmatpush.msra.mxu0 %v2177
    %2195 = vmatpush.msra.mxu0 %v2176
    %2196 = vmatpush.msra.mxu0 %v2175
    %2197 = vmatpush.msra.mxu0 %v2174
    %2198 = vmatpush.msra.mxu0 %v2173
    %2199 = vmatpush.msra.mxu0 %v2172
    %2200 = vmatpush.msra.mxu0 %v2171
    %2201 = vmatpush.msra.mxu0 %v2170
    %2202 = vmatmul.f32.gmra.mxu0 %v2152
    %v2203 = vpop.f32.mrf.mxu0
    %v2204 = vadd.f32 0.0, %v2203
    %2205 = vdwg.mxu0
    %2206 = vmatpush.msra.mxu0 %v2169
    %2207 = vmatpush.msra.mxu0 %v2168
    %2208 = vmatpush.msra.mxu0 %v2167
    %2209 = vmatpush.msra.mxu0 %v2166
    %2210 = vmatpush.msra.mxu0 %v2165
    %2211 = vmatpush.msra.mxu0 %v2164
    %2212 = vmatpush.msra.mxu0 %v2163
    %2213 = vmatpush.msra.mxu0 %v2162
    %2214 = vmatpush.msra.mxu0 %v2161
    %2215 = vmatpush.msra.mxu0 %v2160
    %2216 = vmatpush.msra.mxu0 %v2159
    %2217 = vmatpush.msra.mxu0 %v2158
    %2218 = vmatpush.msra.mxu0 %v2157
    %2219 = vmatpush.msra.mxu0 %v2156
    %2220 = vmatpush.msra.mxu0 %v2155
    %2221 = vmatpush.msra.mxu0 %v2154
    %2222 = vmatmul.f32.gmra.mxu0 %v2085
    %v2223 = vpop.f32.mrf.mxu0
    %v2224 = vadd.f32 %v2204, %v2223
    %2225 = vdwg.mxu0
    %v2226 = vld [vmem:[%s12] sm:$0x1]
    %v2228 = vperm.slane %v2226, 0
    %v2230 = vadd.f32 %v2224, %v2228
    %vm2231 = vcmp.lt.s32.totalorder %v112, 100
    %v2232 = vsel %vm2231, %v2230, -1e+30
    %2233 = vmax.xlane.f32.xlu0 %v2232
    %v2234 = vpop.xlane.xlu0 %2233
    %v2235 = vsub.f32 %v2232, %v2234
    %v2236 = vmul.f32 %v2235, 1.442695
    %v2237 = vpow.pop %v2236
    %2238 = vadd.xlane.f32.xlu0 %v2237
    %v2239 = vpop.xlane.xlu0 %2238
    %v2240 = vlog2.pop %v2239
    %v2241 = vmul.f32 %v2240, 0.6931472
    %v2242 = vsub.f32 %v2235, %v2241
    %2243 = vst [vmem:[%s13] sm:$0xff] %v2242
    // Predicated region
    $region70: #{forward.1} parent=1 // pred_check
      _
    $region71: #{forward.1} parent=1 // pred_check_branch
      %2245 = sbr.rel (0) target = $region73
    $region72: #{forward.1} parent=1 // pred_region
      _
    $region73: #{forward.1} parent=1 // pred_fallthru
      _
    // Predicated region
    $region74: #{forward.1} parent=1 // pred_check
      _
    $region75: #{forward.1} parent=1 // pred_check_branch
      %2247 = sbr.rel (0) target = $region77
    $region76: #{forward.1} parent=1 // pred_region
      _
    $region77: #{forward.1} parent=1 // pred_fallthru
      _
    %2248 = vsyncpa [#allocation3], 1
    %2249 = vsyncpa [#allocation5], 1
    %2250 = vsyncpa [#allocation8], 1

</llo_original>
